<compile_context>
chip_gen: v7x
topology: tpu7x:2x2x1
jax: 0.10.0
libtpu: 0.0.40
codegen_flags: <defaults>
</compile_context>

<pallas_src>
import functools
import math

import jax
import jax.numpy as jnp
from jax import lax
from jax.experimental import pallas as pl
from jax.experimental.pallas import tpu as pltpu


def _cmvn_kernel(x_ref, o_ref, *, norm_mean, norm_var, per_band, eps,
                 lane_groups, bands, bb, compute_dtype, unroll):
    """Normalize `bb` independent (R, L) slabs resident in VMEM.

    per_band: lane (j*bands + f) of a packed row holds band f of row-group j
    (lane_groups groups of R rows each).  full-utterance: the (T, F) slab is
    folded row-major into (R, L) and normalized by a single scalar mean/var.
    """
    f32 = jnp.float32

    def group_mean(v):
        # v: (R, L); statistics always accumulate in f32.
        v = v.astype(f32)
        if not per_band:
            return jnp.mean(v, axis=(0, 1), keepdims=True)            # (1, 1)
        m = jnp.mean(v, axis=0, keepdims=True)                        # (1, L)
        if lane_groups > 1:
            # Combine the lane_groups per-group means with a log2 shift-
            # doubling roll tree (lane_groups is a power of two since it is
            # 128/gcd(F,128)); rolls run on the XLU, off the VALU path.
            s = m
            shift = bands
            while shift < bands * lane_groups:
                s = s + pltpu.roll(s, shift=shift, axis=1)
                shift *= 2
            m = s * (1.0 / lane_groups)
        return m

    def process(i, carry):
        x = x_ref[i]                                                   # (R, L)
        y = x.astype(compute_dtype)
        if norm_mean:
            mu = group_mean(x)
            y = y - mu.astype(compute_dtype)
        if norm_var:
            if norm_mean:
                var = group_mean(jnp.square(y.astype(f32)))
            else:
                xf = x.astype(f32)
                d = xf - group_mean(xf)        # stable two-pass biased variance
                var = group_mean(d * d)
            y = y * lax.rsqrt(var + eps).astype(compute_dtype)
        o_ref[i] = y.astype(o_ref.dtype)
        return carry

    if bb == 1:
        process(0, 0)
    else:
        # Strip-mine over the batch block so temporaries stay slab-sized.
        lax.fori_loop(0, bb, process, 0, unroll=unroll)


def _device_info():
    try:
        kind = jax.devices()[0].device_kind.lower()
    except Exception:
        kind = ""
    k = kind.replace(" ", "")
    is_v7 = ("v7" in k) or ("tpu7" in k)
    # pre-v6 VPUs have no native bf16 elementwise path
    old_gen = any(t in k for t in ("v2", "v3", "v4", "v5"))
    num_tc = 2 if is_v7 else 1
    try:
        vmem_cap = int(pltpu.get_tpu_info().vmem_capacity_bytes)
    except Exception:
        vmem_cap = 64 << 20                      # conservative (v7x per-TC)
    return is_v7, old_gen, num_tc, vmem_cap


def cmvn_transform(feats, *, norm_mean=True, norm_var=True, per_band=True,
                   eps=1e-5, target_block_bytes=None):
    """Pallas implementation of CmvnTransform.forward (gcmvn='' path)."""
    if not norm_mean and not norm_var:
        return feats

    orig_shape = feats.shape
    assert feats.ndim >= 3, "expected N x (C) x T x F"
    T, F = int(orig_shape[-2]), int(orig_shape[-1])
    B = 1
    for d in orig_shape[:-2]:
        B *= int(d)

    is_v7, old_gen, num_tc, vmem_cap = _device_info()
    if target_block_bytes is None:
        # Bigger blocks on v7x (3.2 TB/s HBM) to amortize per-step overhead.
        target_block_bytes = (6 << 20) if is_v7 else (2 << 20)

    # ---- lane-dense repack of each (T, F) slab into (R, L) ----------------
    lane_groups = 1
    if per_band:
        if F % 128 == 0:
            R, L = T, F
        else:
            k = 128 // math.gcd(F, 128)     # smallest k with (k*F) % 128 == 0
            if T % k == 0:
                lane_groups, R, L = k, T // k, k * F        # L = lcm(F, 128)
            else:
                # TODO(synk): ragged T (T % k != 0) keeps a narrow last dim.
                R, L = T, F
    else:
        if F % 128 == 0:
            R, L = T, F
        elif (T * F) % 128 == 0:
            R, L = (T * F) // 128, 128
        else:
            R, L = T, F
    x = feats.reshape((B, R, L))             # pure reshape, no data movement

    itemsize = jnp.dtype(feats.dtype).itemsize
    slab_bytes = R * L * itemsize
    slab_f32 = R * L * 4

    compute_dtype = jnp.float32
    if feats.dtype == jnp.bfloat16 and not old_gen:
        compute_dtype = jnp.bfloat16         # bf16 VPU path on v6e/v7x

    # ---- choose bb: divisor of B, sized to target & VMEM, >=2 steps/TC ----
    budget = int(vmem_cap * 0.7)
    temp_bytes = 6 * slab_f32                # strip-mined per-slab f32 temps
    bb_vmem = (budget - temp_bytes) // (4 * slab_bytes)   # 2x in + 2x out bufs
    assert bb_vmem >= 1, (
        "CMVN (T, F) slab too large for the single-block VMEM path; "
        "a T-tiled sum/sumsq accumulator variant is required for this size.")
    bb_target = max(1, target_block_bytes // slab_bytes)
    bb_cap = int(min(bb_vmem, bb_target, B))

    min_steps = min(B, 2 * num_tc)           # >= 2 grid steps per TensorCore
    divisors = [d for d in range(1, bb_cap + 1) if B % d == 0]
    good = [d for d in divisors if B // d >= min_steps]
    bb = max(good) if good else max(divisors)
    grid = B // bb                           # exact: no pad, no output slice

    needed = 4 * bb * slab_bytes + temp_bytes
    vmem_limit = min(int(vmem_cap * 0.85), max(needed + (4 << 20), 32 << 20))

    kernel = functools.partial(
        _cmvn_kernel,
        norm_mean=norm_mean, norm_var=norm_var, per_band=per_band,
        eps=float(eps), lane_groups=lane_groups, bands=F, bb=bb,
        compute_dtype=compute_dtype, unroll=bool(bb <= 8))

    out = pl.pallas_call(
        kernel,
        out_shape=jax.ShapeDtypeStruct((B, R, L), feats.dtype),
        grid_spec=pltpu.PrefetchScalarGridSpec(
            num_scalar_prefetch=0,
            grid=(grid,),
            in_specs=[pl.BlockSpec((bb, R, L), lambda b: (b, 0, 0))],
            out_specs=pl.BlockSpec((bb, R, L), lambda b: (b, 0, 0)),
        ),
        compiler_params=pltpu.CompilerParams(
            dimension_semantics=("parallel",),
            vmem_limit_bytes=int(vmem_limit)),
    )(x)

    return out.reshape(orig_shape)


def _cmvn_reference(feats, *, norm_mean=True, norm_var=True, per_band=True,
                    eps=1e-5):
    """Pure-JAX reference mirroring the PyTorch forward (gcmvn='')."""
    if not norm_mean and not norm_var:
        return feats
    axis = (-2,) if per_band else (-1, -2)
    x = feats.astype(jnp.float32)
    if norm_mean:
        x = x - jnp.mean(x, axis=axis, keepdims=True)
    if norm_var:
        if norm_mean:
            var = jnp.mean(x * x, axis=axis, keepdims=True)
        else:
            var = jnp.var(x, axis=axis, keepdims=True)   # biased (ddof=0)
        x = x / jnp.sqrt(var + eps)
    return x.astype(feats.dtype)


if __name__ == "__main__":
    key = jax.random.PRNGKey(0)
    k0, k1 = jax.random.split(key)

    # N x C x T x F with F = 80 (typical fbank width): exercises the
    # lcm(F, 128) lane-dense repack (T, 80) -> (T/8, 640).
    N, C, T, F = 2, 4, 16, 80
    feats = jax.random.normal(k0, (N, C, T, F), dtype=jnp.float32) * 3.0 + 1.5

    configs = [
        dict(norm_mean=True,  norm_var=True,  per_band=True),
        dict(norm_mean=True,  norm_var=True,  per_band=False),
        dict(norm_mean=False, norm_var=True,  per_band=True),
        dict(norm_mean=True,  norm_var=False, per_band=True),
    ]
    for cfg in configs:
        out = jax.block_until_ready(cmvn_transform(feats, eps=1e-5, **cfg))
        ref = _cmvn_reference(feats, eps=1e-5, **cfg)
        assert out.shape == feats.shape and out.dtype == feats.dtype, cfg
        assert jnp.allclose(out, ref, atol=1e-4, rtol=1e-4), cfg

    # Narrow-lane fallback correctness (F=33 does not lane-pack).
    feats_odd = jax.random.normal(k1, (3, 12, 33), dtype=jnp.float32) * 2.0 - 0.5
    out = jax.block_until_ready(
        cmvn_transform(feats_odd, norm_mean=True, norm_var=True, per_band=True))
    ref = _cmvn_reference(feats_odd, norm_mean=True, norm_var=True, per_band=True)
    assert jnp.allclose(out, ref, atol=1e-4, rtol=1e-4)

    # bf16 path (center/scale in bf16 on bf16-capable VPUs, stats in f32).
    feats_bf16 = feats.astype(jnp.bfloat16)
    out = jax.block_until_ready(
        cmvn_transform(feats_bf16, norm_mean=True, norm_var=True, per_band=True))
    ref = _cmvn_reference(feats_bf16, norm_mean=True, norm_var=True, per_band=True)
    assert out.shape == feats_bf16.shape and out.dtype == jnp.bfloat16
    assert jnp.allclose(out.astype(jnp.float32), ref.astype(jnp.float32),
                        atol=1e-1, rtol=5e-2)

    print("KERNEL_OK")
</pallas_src>

<mosaic_0001>
module attributes {stable_mosaic.version = 11 : i64} {
  func.func @_cmvn_kernel(%arg0: i32, %arg1: memref<4x2x640xf32, #tpu.memory_space<vmem>>, %arg2: memref<4x2x640xf32, #tpu.memory_space<vmem>>) attributes {dimension_semantics = [#tpu.dimension_semantics<parallel>], iteration_bounds = array<i64: 2>, scalar_prefetch = 0 : i64, scratch_operands = 0 : i64, tpu.core_type = #tpu.core_type<tc>, window_params = [{transform_indices = @transform_0, window_bounds = array<i64: 4, 2, 640>}, {transform_indices = @transform_1, window_bounds = array<i64: 4, 2, 640>}]} {
    %c0_i32 = arith.constant 0 : i32
    %0 = arith.index_cast %c0_i32 : i32 to index
    %c0 = arith.constant 0 : index
    %c0_0 = arith.constant 0 : index
    %1 = vector.load %arg1[%0, %c0, %c0_0] : memref<4x2x640xf32, #tpu.memory_space<vmem>>, vector<1x2x640xf32>
    %2 = vector.shape_cast %1 : vector<1x2x640xf32> to vector<2x640xf32>
    %cst = arith.constant dense<0.000000e+00> : vector<640xf32>
    %3 = vector.multi_reduction <add>, %2, %cst [0] : vector<2x640xf32> to vector<640xf32>
    %4 = vector.shape_cast %3 : vector<640xf32> to vector<1x640xf32>
    %cst_1 = arith.constant 2.000000e+00 : f32
    %5 = vector.broadcast %cst_1 : f32 to vector<1x640xf32>
    %6 = arith.divf %4, %5 : vector<1x640xf32>
    %c80_i32 = arith.constant 80 : i32
    %7 = tpu.dynamic_rotate %6 by %c80_i32 dim 1 : vector<1x640xf32>, i32 -> vector<1x640xf32>
    %8 = arith.addf %6, %7 : vector<1x640xf32>
    %c160_i32 = arith.constant 160 : i32
    %9 = tpu.dynamic_rotate %8 by %c160_i32 dim 1 : vector<1x640xf32>, i32 -> vector<1x640xf32>
    %10 = arith.addf %8, %9 : vector<1x640xf32>
    %c320_i32 = arith.constant 320 : i32
    %11 = tpu.dynamic_rotate %10 by %c320_i32 dim 1 : vector<1x640xf32>, i32 -> vector<1x640xf32>
    %12 = arith.addf %10, %11 : vector<1x640xf32>
    %cst_2 = arith.constant 1.250000e-01 : f32
    %13 = vector.broadcast %cst_2 : f32 to vector<1x640xf32>
    %14 = arith.mulf %12, %13 : vector<1x640xf32>
    %15 = vector.broadcast %14 : vector<1x640xf32> to vector<2x640xf32>
    %16 = arith.subf %2, %15 : vector<2x640xf32>
    %17 = arith.mulf %16, %16 : vector<2x640xf32>
    %cst_3 = arith.constant dense<0.000000e+00> : vector<640xf32>
    %18 = vector.multi_reduction <add>, %17, %cst_3 [0] : vector<2x640xf32> to vector<640xf32>
    %19 = vector.shape_cast %18 : vector<640xf32> to vector<1x640xf32>
    %cst_4 = arith.constant 2.000000e+00 : f32
    %20 = vector.broadcast %cst_4 : f32 to vector<1x640xf32>
    %21 = arith.divf %19, %20 : vector<1x640xf32>
    %c80_i32_5 = arith.constant 80 : i32
    %22 = tpu.dynamic_rotate %21 by %c80_i32_5 dim 1 : vector<1x640xf32>, i32 -> vector<1x640xf32>
    %23 = arith.addf %21, %22 : vector<1x640xf32>
    %c160_i32_6 = arith.constant 160 : i32
    %24 = tpu.dynamic_rotate %23 by %c160_i32_6 dim 1 : vector<1x640xf32>, i32 -> vector<1x640xf32>
    %25 = arith.addf %23, %24 : vector<1x640xf32>
    %c320_i32_7 = arith.constant 320 : i32
    %26 = tpu.dynamic_rotate %25 by %c320_i32_7 dim 1 : vector<1x640xf32>, i32 -> vector<1x640xf32>
    %27 = arith.addf %25, %26 : vector<1x640xf32>
    %cst_8 = arith.constant 1.250000e-01 : f32
    %28 = vector.broadcast %cst_8 : f32 to vector<1x640xf32>
    %29 = arith.mulf %27, %28 : vector<1x640xf32>
    %cst_9 = arith.constant 9.99999974E-6 : f32
    %30 = vector.broadcast %cst_9 : f32 to vector<1x640xf32>
    %31 = arith.addf %29, %30 : vector<1x640xf32>
    %32 = math.rsqrt %31 : vector<1x640xf32>
    %33 = vector.broadcast %32 : vector<1x640xf32> to vector<2x640xf32>
    %34 = arith.mulf %16, %33 : vector<2x640xf32>
    %35 = arith.index_cast %c0_i32 : i32 to index
    %c0_10 = arith.constant 0 : index
    %c0_11 = arith.constant 0 : index
    %36 = vector.load %arg2[%35, %c0_10, %c0_11] : memref<4x2x640xf32, #tpu.memory_space<vmem>>, vector<1x2x640xf32>
    %37 = vector.shape_cast %36 : vector<1x2x640xf32> to vector<2x640xf32>
    %38 = vector.shape_cast %34 : vector<2x640xf32> to vector<1x2x640xf32>
    tpu.vector_store %arg2[%35, %c0_10, %c0_11], %38 {strides = array<i32>} : memref<4x2x640xf32, #tpu.memory_space<vmem>>, vector<1x2x640xf32>,
    %c1_i32 = arith.constant 1 : i32
    %39 = arith.index_cast %c1_i32 : i32 to index
    %c0_12 = arith.constant 0 : index
    %c0_13 = arith.constant 0 : index
    %40 = vector.load %arg1[%39, %c0_12, %c0_13] : memref<4x2x640xf32, #tpu.memory_space<vmem>>, vector<1x2x640xf32>
    %41 = vector.shape_cast %40 : vector<1x2x640xf32> to vector<2x640xf32>
    %cst_14 = arith.constant dense<0.000000e+00> : vector<640xf32>
    %42 = vector.multi_reduction <add>, %41, %cst_14 [0] : vector<2x640xf32> to vector<640xf32>
    %43 = vector.shape_cast %42 : vector<640xf32> to vector<1x640xf32>
    %cst_15 = arith.constant 2.000000e+00 : f32
    %44 = vector.broadcast %cst_15 : f32 to vector<1x640xf32>
    %45 = arith.divf %43, %44 : vector<1x640xf32>
    %c80_i32_16 = arith.constant 80 : i32
    %46 = tpu.dynamic_rotate %45 by %c80_i32_16 dim 1 : vector<1x640xf32>, i32 -> vector<1x640xf32>
    %47 = arith.addf %45, %46 : vector<1x640xf32>
    %c160_i32_17 = arith.constant 160 : i32
    %48 = tpu.dynamic_rotate %47 by %c160_i32_17 dim 1 : vector<1x640xf32>, i32 -> vector<1x640xf32>
    %49 = arith.addf %47, %48 : vector<1x640xf32>
    %c320_i32_18 = arith.constant 320 : i32
    %50 = tpu.dynamic_rotate %49 by %c320_i32_18 dim 1 : vector<1x640xf32>, i32 -> vector<1x640xf32>
    %51 = arith.addf %49, %50 : vector<1x640xf32>
    %cst_19 = arith.constant 1.250000e-01 : f32
    %52 = vector.broadcast %cst_19 : f32 to vector<1x640xf32>
    %53 = arith.mulf %51, %52 : vector<1x640xf32>
    %54 = vector.broadcast %53 : vector<1x640xf32> to vector<2x640xf32>
    %55 = arith.subf %41, %54 : vector<2x640xf32>
    %56 = arith.mulf %55, %55 : vector<2x640xf32>
    %cst_20 = arith.constant dense<0.000000e+00> : vector<640xf32>
    %57 = vector.multi_reduction <add>, %56, %cst_20 [0] : vector<2x640xf32> to vector<640xf32>
    %58 = vector.shape_cast %57 : vector<640xf32> to vector<1x640xf32>
    %cst_21 = arith.constant 2.000000e+00 : f32
    %59 = vector.broadcast %cst_21 : f32 to vector<1x640xf32>
    %60 = arith.divf %58, %59 : vector<1x640xf32>
    %c80_i32_22 = arith.constant 80 : i32
    %61 = tpu.dynamic_rotate %60 by %c80_i32_22 dim 1 : vector<1x640xf32>, i32 -> vector<1x640xf32>
    %62 = arith.addf %60, %61 : vector<1x640xf32>
    %c160_i32_23 = arith.constant 160 : i32
    %63 = tpu.dynamic_rotate %62 by %c160_i32_23 dim 1 : vector<1x640xf32>, i32 -> vector<1x640xf32>
    %64 = arith.addf %62, %63 : vector<1x640xf32>
    %c320_i32_24 = arith.constant 320 : i32
    %65 = tpu.dynamic_rotate %64 by %c320_i32_24 dim 1 : vector<1x640xf32>, i32 -> vector<1x640xf32>
    %66 = arith.addf %64, %65 : vector<1x640xf32>
    %cst_25 = arith.constant 1.250000e-01 : f32
    %67 = vector.broadcast %cst_25 : f32 to vector<1x640xf32>
    %68 = arith.mulf %66, %67 : vector<1x640xf32>
    %cst_26 = arith.constant 9.99999974E-6 : f32
    %69 = vector.broadcast %cst_26 : f32 to vector<1x640xf32>
    %70 = arith.addf %68, %69 : vector<1x640xf32>
    %71 = math.rsqrt %70 : vector<1x640xf32>
    %72 = vector.broadcast %71 : vector<1x640xf32> to vector<2x640xf32>
    %73 = arith.mulf %55, %72 : vector<2x640xf32>
    %74 = arith.index_cast %c1_i32 : i32 to index
    %c0_27 = arith.constant 0 : index
    %c0_28 = arith.constant 0 : index
    %75 = vector.load %arg2[%74, %c0_27, %c0_28] : memref<4x2x640xf32, #tpu.memory_space<vmem>>, vector<1x2x640xf32>
    %76 = vector.shape_cast %75 : vector<1x2x640xf32> to vector<2x640xf32>
    %77 = vector.shape_cast %73 : vector<2x640xf32> to vector<1x2x640xf32>
    tpu.vector_store %arg2[%74, %c0_27, %c0_28], %77 {strides = array<i32>} : memref<4x2x640xf32, #tpu.memory_space<vmem>>, vector<1x2x640xf32>,
    %c2_i32 = arith.constant 2 : i32
    %78 = arith.index_cast %c2_i32 : i32 to index
    %c0_29 = arith.constant 0 : index
    %c0_30 = arith.constant 0 : index
    %79 = vector.load %arg1[%78, %c0_29, %c0_30] : memref<4x2x640xf32, #tpu.memory_space<vmem>>, vector<1x2x640xf32>
    %80 = vector.shape_cast %79 : vector<1x2x640xf32> to vector<2x640xf32>
    %cst_31 = arith.constant dense<0.000000e+00> : vector<640xf32>
    %81 = vector.multi_reduction <add>, %80, %cst_31 [0] : vector<2x640xf32> to vector<640xf32>
    %82 = vector.shape_cast %81 : vector<640xf32> to vector<1x640xf32>
    %cst_32 = arith.constant 2.000000e+00 : f32
    %83 = vector.broadcast %cst_32 : f32 to vector<1x640xf32>
    %84 = arith.divf %82, %83 : vector<1x640xf32>
    %c80_i32_33 = arith.constant 80 : i32
    %85 = tpu.dynamic_rotate %84 by %c80_i32_33 dim 1 : vector<1x640xf32>, i32 -> vector<1x640xf32>
    %86 = arith.addf %84, %85 : vector<1x640xf32>
    %c160_i32_34 = arith.constant 160 : i32
    %87 = tpu.dynamic_rotate %86 by %c160_i32_34 dim 1 : vector<1x640xf32>, i32 -> vector<1x640xf32>
    %88 = arith.addf %86, %87 : vector<1x640xf32>
    %c320_i32_35 = arith.constant 320 : i32
    %89 = tpu.dynamic_rotate %88 by %c320_i32_35 dim 1 : vector<1x640xf32>, i32 -> vector<1x640xf32>
    %90 = arith.addf %88, %89 : vector<1x640xf32>
    %cst_36 = arith.constant 1.250000e-01 : f32
    %91 = vector.broadcast %cst_36 : f32 to vector<1x640xf32>
    %92 = arith.mulf %90, %91 : vector<1x640xf32>
    %93 = vector.broadcast %92 : vector<1x640xf32> to vector<2x640xf32>
    %94 = arith.subf %80, %93 : vector<2x640xf32>
    %95 = arith.mulf %94, %94 : vector<2x640xf32>
    %cst_37 = arith.constant dense<0.000000e+00> : vector<640xf32>
    %96 = vector.multi_reduction <add>, %95, %cst_37 [0] : vector<2x640xf32> to vector<640xf32>
    %97 = vector.shape_cast %96 : vector<640xf32> to vector<1x640xf32>
    %cst_38 = arith.constant 2.000000e+00 : f32
    %98 = vector.broadcast %cst_38 : f32 to vector<1x640xf32>
    %99 = arith.divf %97, %98 : vector<1x640xf32>
    %c80_i32_39 = arith.constant 80 : i32
    %100 = tpu.dynamic_rotate %99 by %c80_i32_39 dim 1 : vector<1x640xf32>, i32 -> vector<1x640xf32>
    %101 = arith.addf %99, %100 : vector<1x640xf32>
    %c160_i32_40 = arith.constant 160 : i32
    %102 = tpu.dynamic_rotate %101 by %c160_i32_40 dim 1 : vector<1x640xf32>, i32 -> vector<1x640xf32>
    %103 = arith.addf %101, %102 : vector<1x640xf32>
    %c320_i32_41 = arith.constant 320 : i32
    %104 = tpu.dynamic_rotate %103 by %c320_i32_41 dim 1 : vector<1x640xf32>, i32 -> vector<1x640xf32>
    %105 = arith.addf %103, %104 : vector<1x640xf32>
    %cst_42 = arith.constant 1.250000e-01 : f32
    %106 = vector.broadcast %cst_42 : f32 to vector<1x640xf32>
    %107 = arith.mulf %105, %106 : vector<1x640xf32>
    %cst_43 = arith.constant 9.99999974E-6 : f32
    %108 = vector.broadcast %cst_43 : f32 to vector<1x640xf32>
    %109 = arith.addf %107, %108 : vector<1x640xf32>
    %110 = math.rsqrt %109 : vector<1x640xf32>
    %111 = vector.broadcast %110 : vector<1x640xf32> to vector<2x640xf32>
    %112 = arith.mulf %94, %111 : vector<2x640xf32>
    %113 = arith.index_cast %c2_i32 : i32 to index
    %c0_44 = arith.constant 0 : index
    %c0_45 = arith.constant 0 : index
    %114 = vector.load %arg2[%113, %c0_44, %c0_45] : memref<4x2x640xf32, #tpu.memory_space<vmem>>, vector<1x2x640xf32>
    %115 = vector.shape_cast %114 : vector<1x2x640xf32> to vector<2x640xf32>
    %116 = vector.shape_cast %112 : vector<2x640xf32> to vector<1x2x640xf32>
    tpu.vector_store %arg2[%113, %c0_44, %c0_45], %116 {strides = array<i32>} : memref<4x2x640xf32, #tpu.memory_space<vmem>>, vector<1x2x640xf32>,
    %c3_i32 = arith.constant 3 : i32
    %117 = arith.index_cast %c3_i32 : i32 to index
    %c0_46 = arith.constant 0 : index
    %c0_47 = arith.constant 0 : index
    %118 = vector.load %arg1[%117, %c0_46, %c0_47] : memref<4x2x640xf32, #tpu.memory_space<vmem>>, vector<1x2x640xf32>
    %119 = vector.shape_cast %118 : vector<1x2x640xf32> to vector<2x640xf32>
    %cst_48 = arith.constant dense<0.000000e+00> : vector<640xf32>
    %120 = vector.multi_reduction <add>, %119, %cst_48 [0] : vector<2x640xf32> to vector<640xf32>
    %121 = vector.shape_cast %120 : vector<640xf32> to vector<1x640xf32>
    %cst_49 = arith.constant 2.000000e+00 : f32
    %122 = vector.broadcast %cst_49 : f32 to vector<1x640xf32>
    %123 = arith.divf %121, %122 : vector<1x640xf32>
    %c80_i32_50 = arith.constant 80 : i32
    %124 = tpu.dynamic_rotate %123 by %c80_i32_50 dim 1 : vector<1x640xf32>, i32 -> vector<1x640xf32>
    %125 = arith.addf %123, %124 : vector<1x640xf32>
    %c160_i32_51 = arith.constant 160 : i32
    %126 = tpu.dynamic_rotate %125 by %c160_i32_51 dim 1 : vector<1x640xf32>, i32 -> vector<1x640xf32>
    %127 = arith.addf %125, %126 : vector<1x640xf32>
    %c320_i32_52 = arith.constant 320 : i32
    %128 = tpu.dynamic_rotate %127 by %c320_i32_52 dim 1 : vector<1x640xf32>, i32 -> vector<1x640xf32>
    %129 = arith.addf %127, %128 : vector<1x640xf32>
    %cst_53 = arith.constant 1.250000e-01 : f32
    %130 = vector.broadcast %cst_53 : f32 to vector<1x640xf32>
    %131 = arith.mulf %129, %130 : vector<1x640xf32>
    %132 = vector.broadcast %131 : vector<1x640xf32> to vector<2x640xf32>
    %133 = arith.subf %119, %132 : vector<2x640xf32>
    %134 = arith.mulf %133, %133 : vector<2x640xf32>
    %cst_54 = arith.constant dense<0.000000e+00> : vector<640xf32>
    %135 = vector.multi_reduction <add>, %134, %cst_54 [0] : vector<2x640xf32> to vector<640xf32>
    %136 = vector.shape_cast %135 : vector<640xf32> to vector<1x640xf32>
    %cst_55 = arith.constant 2.000000e+00 : f32
    %137 = vector.broadcast %cst_55 : f32 to vector<1x640xf32>
    %138 = arith.divf %136, %137 : vector<1x640xf32>
    %c80_i32_56 = arith.constant 80 : i32
    %139 = tpu.dynamic_rotate %138 by %c80_i32_56 dim 1 : vector<1x640xf32>, i32 -> vector<1x640xf32>
    %140 = arith.addf %138, %139 : vector<1x640xf32>
    %c160_i32_57 = arith.constant 160 : i32
    %141 = tpu.dynamic_rotate %140 by %c160_i32_57 dim 1 : vector<1x640xf32>, i32 -> vector<1x640xf32>
    %142 = arith.addf %140, %141 : vector<1x640xf32>
    %c320_i32_58 = arith.constant 320 : i32
    %143 = tpu.dynamic_rotate %142 by %c320_i32_58 dim 1 : vector<1x640xf32>, i32 -> vector<1x640xf32>
    %144 = arith.addf %142, %143 : vector<1x640xf32>
    %cst_59 = arith.constant 1.250000e-01 : f32
    %145 = vector.broadcast %cst_59 : f32 to vector<1x640xf32>
    %146 = arith.mulf %144, %145 : vector<1x640xf32>
    %cst_60 = arith.constant 9.99999974E-6 : f32
    %147 = vector.broadcast %cst_60 : f32 to vector<1x640xf32>
    %148 = arith.addf %146, %147 : vector<1x640xf32>
    %149 = math.rsqrt %148 : vector<1x640xf32>
    %150 = vector.broadcast %149 : vector<1x640xf32> to vector<2x640xf32>
    %151 = arith.mulf %133, %150 : vector<2x640xf32>
    %152 = arith.index_cast %c3_i32 : i32 to index
    %c0_61 = arith.constant 0 : index
    %c0_62 = arith.constant 0 : index
    %153 = vector.load %arg2[%152, %c0_61, %c0_62] : memref<4x2x640xf32, #tpu.memory_space<vmem>>, vector<1x2x640xf32>
    %154 = vector.shape_cast %153 : vector<1x2x640xf32> to vector<2x640xf32>
    %155 = vector.shape_cast %151 : vector<2x640xf32> to vector<1x2x640xf32>
    tpu.vector_store %arg2[%152, %c0_61, %c0_62], %155 {strides = array<i32>} : memref<4x2x640xf32, #tpu.memory_space<vmem>>, vector<1x2x640xf32>,
    %c4_i32 = arith.constant 4 : i32
    return
  }
  func.func @transform_0(%arg0: i32) -> (i32, i32, i32) {
    %c0_i32 = arith.constant 0 : i32
    %c0_i32_0 = arith.constant 0 : i32
    %c0_i32_1 = arith.constant 0 : i32
    return %arg0, %c0_i32, %c0_i32_0 : i32, i32, i32
  }
  func.func @transform_1(%arg0: i32) -> (i32, i32, i32) {
    %c0_i32 = arith.constant 0 : i32
    %c0_i32_0 = arith.constant 0 : i32
    %c0_i32_1 = arith.constant 0 : i32
    return %arg0, %c0_i32, %c0_i32_0 : i32, i32, i32
  }
}

</mosaic_0001>

<llo_original>
// kernel: tpu_custom_call.1
$region0: #{tpu_custom_call.1}
  #allocation0 [shape = 'u32[]', space=smem, size = 0x4, offset = 0x4, fixed_abs, tag = 'smem constant byte address 0x4 - core index']
  #allocation1 [shape = 'u32[144,128]{1,0:T(1,128)}', space=vmem, size = 0x12000, scoped, tag = 'internal scratch']
  %s0 = inlined_call_operand.hbm [shape: f32[8,2,640], index: 0, kind: input, shape index: {}]
  %s1 = inlined_call_operand.hbm [shape: f32[8,2,640], index: 1, kind: output, shape index: {}]
  %s2 = sld [smem:[#allocation0]]
  $region41: #{tpu_custom_call.1} parent=0
    _
  %s4 = ssub.s32 1, %s2
  %s5 = scalar_select 0, %s4, %s2
  $region1: #{tpu_custom_call.1} parent=0
    #allocation2 [shape = 'u8[40960]{0}', space=vmem, size = 0xa000, scoped, tag = 'input window, operand 0']
    #allocation3 [shape = 's32[2]{0}', space=sflag, size = 0x8, scoped, tag = 'scoped memory for tpu_custom_call.1']
    #allocation4 [shape = 's32[2]{0}', space=sflag, size = 0x8, scoped, tag = 'scoped memory for tpu_custom_call.1']
    #allocation5 [shape = 'u8[40960]{0}', space=vmem, size = 0xa000, scoped, tag = 'output window, operand 0']
    %6 = vsyncpa [#allocation3], 0
    %s7 = scalar_lea.sflag [#allocation3], 1
    %8 = vsyncpa %s7, 0
    %9 = vsyncpa [#allocation4], 0
    %s10 = scalar_lea.sflag [#allocation4], 1
    %11 = vsyncpa %s10, 0
    loop: start=0, step=1, limit=4
    $region2: #{tpu_custom_call.1} parent=1 // loop_pre_header
      _
    $region3: #{tpu_custom_call.1} parent=1 // loop_header
      %s13 = sphi 0, %s17
      %p14 = scmp.ge.s32.totalorder %s13, 4
      %s23 = sphi 0, %s25
      %s26 = sphi 0, %s23
      %s27 = sphi 0, %s26
      %s43 = sphi 0, %s27
      %s49 = sphi 0, %s51
      %s52 = sphi 0, %s49
      %s53 = sphi 0, %s52
      %s69 = sphi 0, %s53
    $region4: #{tpu_custom_call.1} parent=1 // loop_header_branch
      %16 = sbr.rel (%p14) target = $region8
    $region5: #{tpu_custom_call.1} parent=1 // loop_body
      %s18 = ssub.s32 %s13, 1
      %s19 = ssub.s32 %s13, 2
      %s20 = sadd.s32 %s13, 1
      %s21 = ssub.s32 %s13, %s20
      %p22 = scmp.eq.s32.totalorder %s21, 0
      %s24 = sadd.s32 %s23, 1
      %s25 = scalar_select %p22, %s23, %s24
      %p28 = pneg %p22
      %p29 = scmp.eq.s32.totalorder %s13, 1
      %p30 = por %p28, %p29
      %p31 = scmp.ne.s32.totalorder %s23, %s26
      %p32 = scmp.eq.s32.totalorder %s13, 0
      %p33 = por %p31, %p32
      %p34 = scmp.ne.s32.totalorder %s23, %s26
      %p35 = scmp.eq.s32.totalorder %s18, 1
      %p36 = por %p34, %p35
      %p37 = scmp.ne.s32.totalorder %s26, %s27
      %p38 = scmp.eq.s32.totalorder %s18, 0
      %p39 = por %p37, %p38
      %p40 = scmp.ne.s32.totalorder %s26, %s27
      %p41 = scmp.eq.s32.totalorder %s19, 1
      %p42 = por %p40, %p41
      %p44 = scmp.ne.s32.totalorder %s27, %s43
      %p45 = scmp.eq.s32.totalorder %s19, 0
      %p46 = por %p44, %p45
      %s47 = ssub.s32 %s13, %s20
      %p48 = scmp.eq.s32.totalorder %s47, 0
      %s50 = sadd.s32 %s49, 1
      %s51 = scalar_select %p48, %s49, %s50
      %p54 = pneg %p48
      %p55 = scmp.eq.s32.totalorder %s13, 1
      %p56 = por %p54, %p55
      %p57 = scmp.ne.s32.totalorder %s49, %s52
      %p58 = scmp.eq.s32.totalorder %s13, 0
      %p59 = por %p57, %p58
      %p60 = scmp.ne.s32.totalorder %s49, %s52
      %p61 = scmp.eq.s32.totalorder %s18, 1
      %p62 = por %p60, %p61
      %p63 = scmp.ne.s32.totalorder %s52, %s53
      %p64 = scmp.eq.s32.totalorder %s18, 0
      %p65 = por %p63, %p64
      %p66 = scmp.ne.s32.totalorder %s52, %s53
      %p67 = scmp.eq.s32.totalorder %s19, 1
      %p68 = por %p66, %p67
      %p70 = scmp.ne.s32.totalorder %s53, %s69
      %p71 = scmp.eq.s32.totalorder %s19, 0
      %p72 = por %p70, %p71
      %p73 = scmp.le.s32.totalorder 1, %s13
      %p74 = scmp.lt.s32.totalorder %s13, 3
      %p75 = pnand %p73, %p74
      %p76 = pneg %p75
      // Predicated region
      $region9: #{tpu_custom_call.1} parent=5 // pred_check
        _
      $region10: #{tpu_custom_call.1} parent=5 // pred_check_branch
        %78 = sbr.rel (%p75) target = $region12
      $region11: #{tpu_custom_call.1} parent=5 // pred_region
        %s79 = ssub.s32 %s13, 1
      $region12: #{tpu_custom_call.1} parent=5 // pred_fallthru
        _
      %p80 = scmp.lt.s32.totalorder %s13, 2
      // Predicated region
      $region13: #{tpu_custom_call.1} parent=5 // pred_check
        %p81 = pneg %p80
      $region14: #{tpu_custom_call.1} parent=5 // pred_check_branch
        %83 = sbr.rel (%p81) target = $region16
      $region15: #{tpu_custom_call.1} parent=5 // pred_region
        // Predicated region
        $region17: #{tpu_custom_call.1} parent=15 // pred_check
          %p84 = pneg %p33
        $region18: #{tpu_custom_call.1} parent=15 // pred_check_branch
          %86 = sbr.rel (%p84) target = $region20
        $region19: #{tpu_custom_call.1} parent=15 // pred_region
          %s87 = sand.u32 %s23, 1
          %s88 = scalar_lea.sflag [#allocation3], %s87
          %s89 = sand.u32 %s23, 1
          %s90 = smul.addr %s89, 40
          %s91 = scalar_lea.vmem [#allocation2], %s90
          %s92 = smul.u32 4, %s13
          %s94 = ssub.s32 640, 640
          %95 = vsyncadd %s88, %s94
          %s96 = smul.addr %s92, 5
          %s97 = smul.addr %s96, 32
          %s98 = scalar_lea.hbm %s0, %s97
          %s99 = sshll.u32 %s91, 4
          %s100 = int_to_ptr.vmem [resolvable:$true] %s99
          %105 = dma.hbm_to_vmem [thread:$0]  %s98, 640, %s100, %s88, 160, 160, 10
        $region20: #{tpu_custom_call.1} parent=15 // pred_fallthru
          _
      $region16: #{tpu_custom_call.1} parent=5 // pred_fallthru
        _
      %p106 = scmp.le.s32.totalorder 1, %s13
      %p107 = scmp.lt.s32.totalorder %s13, 3
      %p108 = pnand %p106, %p107
      %p109 = pneg %p108
      // Predicated region
      $region21: #{tpu_custom_call.1} parent=5 // pred_check
        _
      $region22: #{tpu_custom_call.1} parent=5 // pred_check_branch
        %111 = sbr.rel (%p108) target = $region24
      $region23: #{tpu_custom_call.1} parent=5 // pred_region
        %s112 = ssub.s32 %s13, 1
        %s113 = sand.u32 %s26, 1
        %s114 = scalar_lea.sflag [#allocation3], %s113
        %s115 = sand.u32 %s26, 1
        %s116 = smul.addr %s115, 40
        %s117 = scalar_lea.vmem [#allocation2], %s116
        // Predicated region
        $region25: #{tpu_custom_call.1} parent=23 // pred_check
          %p118 = pneg %p39
        $region26: #{tpu_custom_call.1} parent=23 // pred_check_branch
          %120 = sbr.rel (%p118) target = $region28
        $region27: #{tpu_custom_call.1} parent=23 // pred_region
          %121 = dma.done %s114, 640
        $region28: #{tpu_custom_call.1} parent=23 // pred_fallthru
          _
        %s122 = sand.u32 %s26, 1
        %s123 = scalar_lea.sflag [#allocation3], %s122
        %s124 = sand.u32 %s26, 1
        %s125 = smul.addr %s124, 40
        %s126 = scalar_lea.vmem [#allocation2], %s125
        %p127 = pneg %p39
        %p128 = pneg %p36
        %p129 = pneg %p65
        %p130 = pneg %p62
        %s131 = sand.u32 %s52, 1
        %s132 = scalar_lea.sflag [#allocation4], %s131
        %s133 = sand.u32 %s52, 1
        %s134 = smul.addr %s133, 40
        %s135 = scalar_lea.vmem [#allocation5], %s134
        %s136 = smul.u32 4, %s18
        %s137 = smul.u32 4, %s18
        %v138 = vld [vmem:[%s117] sm:$0xff]
        %v139 = vld [vmem:[%s117 + $0x8] sm:$0x3]
        %v142 = vcombine.high %v138, %v138
        %v144 = vunpack.c.l.s4 1983009808
        %v145 = vunpack.c.0.s8 %v144
        %v146 = vlaneseq
        %v147 = vshrl.u32 %v146, 7
        %v148 = vsub.s32 %v145, %v147
        %v149 = vrot.slane %v138, %v148
        %v151 = vunpack.c.l.s4 1983009808
        %v152 = vunpack.c.0.s8 %v151
        %v153 = vlaneseq
        %v154 = vshrl.u32 %v153, 7
        %v155 = vsub.s32 %v152, %v154
        %v156 = vrot.slane %v142, %v155
        %v157 = vcombine.high %v149, %v149
        %v158 = vcombine.high %v156, %v156
        %v160 = vunpack.c.l.s4 1983009808
        %v161 = vunpack.c.0.s8 %v160
        %v162 = vlaneseq
        %v163 = vshrl.u32 %v162, 7
        %v164 = vsub.s32 %v161, %v163
        %v165 = vrot.slane %v139, %v164
        %vm171 = vcmask 1041408
        %v172 = vsel %vm171, %v149, 0.0
        %v173 = vrot.slane %v172, 4
        %v174 = vadd.f32 %v172, %v173
        %v175 = vrot.slane %v174, 2
        %v176 = vadd.f32 %v174, %v175
        %v177 = vrot.slane %v176, 1
        %v178 = vadd.f32 %v176, %v177
        %v179 = vsel %vm171, %v157, 0.0
        %v180 = vrot.slane %v179, 4
        %v181 = vadd.f32 %v179, %v180
        %v182 = vrot.slane %v181, 2
        %v183 = vadd.f32 %v181, %v182
        %v184 = vrot.slane %v183, 1
        %v185 = vadd.f32 %v183, %v184
        %v186 = vsel %vm171, %v156, 0.0
        %v187 = vrot.slane %v186, 4
        %v188 = vadd.f32 %v186, %v187
        %v189 = vrot.slane %v188, 2
        %v190 = vadd.f32 %v188, %v189
        %v191 = vrot.slane %v190, 1
        %v192 = vadd.f32 %v190, %v191
        %v193 = vsel %vm171, %v158, 0.0
        %v194 = vrot.slane %v193, 4
        %v195 = vadd.f32 %v193, %v194
        %v196 = vrot.slane %v195, 2
        %v197 = vadd.f32 %v195, %v196
        %v198 = vrot.slane %v197, 1
        %v199 = vadd.f32 %v197, %v198
        %v200 = vsel %vm171, %v165, 0.0
        %v201 = vrot.slane %v200, 4
        %v202 = vadd.f32 %v200, %v201
        %v203 = vrot.slane %v202, 2
        %v204 = vadd.f32 %v202, %v203
        %v205 = vrot.slane %v204, 1
        %v206 = vadd.f32 %v204, %v205
        %v207 = vrcp.pop 2.0
        %v208 = vmul.f32 %v178, %v207
        %v209 = vmul.f32 %v185, %v207
        %v210 = vmul.f32 %v192, %v207
        %v211 = vmul.f32 %v199, %v207
        %v212 = vmul.f32 %v206, %v207
        %213 = vrot.lane.b32.xlu0 %v208, 80
        %v214 = vpop.permute.xlu0 %213
        %215 = vrot.lane.b32.xlu0 %v209, 80
        %v216 = vpop.permute.xlu0 %215
        %217 = vrot.lane.b32.xlu0 %v210, 80
        %v218 = vpop.permute.xlu0 %217
        %219 = vrot.lane.b32.xlu0 %v211, 80
        %v220 = vpop.permute.xlu0 %219
        %221 = vrot.lane.b32.xlu0 %v212, 80
        %v222 = vpop.permute.xlu0 %221
        %v223 = vlaneseq
        %v224 = vand.u32 %v223, 127
        %vm225 = vcmp.lt.s32.totalorder %v224, 80
        %v226 = vsel %vm225, %v220, %v222
        %v227 = vsel %vm225, %v218, %v220
        %v228 = vsel %vm225, %v216, %v218
        %v229 = vsel %vm225, %v214, %v216
        %v230 = vsel %vm225, %v222, %v214
        %v231 = vadd.f32 %v208, %v230
        %v232 = vadd.f32 %v209, %v229
        %v233 = vadd.f32 %v210, %v228
        %v234 = vadd.f32 %v211, %v227
        %v235 = vadd.f32 %v212, %v226
        %236 = vrot.lane.b32.xlu0 %v231, 32
        %v237 = vpop.permute.xlu0 %236
        %238 = vrot.lane.b32.xlu0 %v232, 32
        %v239 = vpop.permute.xlu0 %238
        %240 = vrot.lane.b32.xlu0 %v233, 32
        %v241 = vpop.permute.xlu0 %240
        %242 = vrot.lane.b32.xlu0 %v234, 32
        %v243 = vpop.permute.xlu0 %242
        %244 = vrot.lane.b32.xlu0 %v235, 32
        %v245 = vpop.permute.xlu0 %244
        %vm246 = vcmp.lt.s32.totalorder %v224, 32
        %v247 = vsel %vm246, %v243, %v245
        %v248 = vsel %vm246, %v241, %v243
        %v249 = vsel %vm246, %v239, %v241
        %v250 = vsel %vm246, %v237, %v239
        %v251 = vsel %vm246, %v245, %v237
        %v252 = vadd.f32 %v231, %v247
        %v253 = vadd.f32 %v232, %v251
        %v254 = vadd.f32 %v233, %v250
        %v255 = vadd.f32 %v234, %v249
        %v256 = vadd.f32 %v235, %v248
        %257 = vrot.lane.b32.xlu0 %v252, 64
        %v258 = vpop.permute.xlu0 %257
        %259 = vrot.lane.b32.xlu0 %v253, 64
        %v260 = vpop.permute.xlu0 %259
        %261 = vrot.lane.b32.xlu0 %v254, 64
        %v262 = vpop.permute.xlu0 %261
        %263 = vrot.lane.b32.xlu0 %v255, 64
        %v264 = vpop.permute.xlu0 %263
        %265 = vrot.lane.b32.xlu0 %v256, 64
        %v266 = vpop.permute.xlu0 %265
        %vm267 = vcmp.lt.s32.totalorder %v224, 64
        %v268 = vsel %vm267, %v264, %v266
        %v269 = vsel %vm267, %v262, %v264
        %v270 = vsel %vm267, %v260, %v262
        %v271 = vsel %vm267, %v258, %v260
        %v272 = vsel %vm267, %v266, %v258
        %v273 = vadd.f32 %v252, %v269
        %v274 = vadd.f32 %v253, %v268
        %v275 = vadd.f32 %v254, %v272
        %v276 = vadd.f32 %v255, %v271
        %v277 = vadd.f32 %v256, %v270
        %v278 = vmul.f32 %v273, 0.125
        %v279 = vmul.f32 %v274, 0.125
        %v280 = vmul.f32 %v275, 0.125
        %v281 = vmul.f32 %v276, 0.125
        %v282 = vmul.f32 %v277, 0.125
        %v283 = vlaneseq
        %v284 = vshrl.u32 %v283, 7
        %v285 = vsub.s32 0, %v284
        %v286 = vrot.slane %v278, %v285
        %v287 = vlaneseq
        %v288 = vshrl.u32 %v287, 7
        %v289 = vsub.s32 0, %v288
        %v290 = vrot.slane %v279, %v289
        %v291 = vlaneseq
        %v292 = vshrl.u32 %v291, 7
        %v293 = vsub.s32 0, %v292
        %v294 = vrot.slane %v280, %v293
        %v295 = vlaneseq
        %v296 = vshrl.u32 %v295, 7
        %v297 = vsub.s32 0, %v296
        %v298 = vrot.slane %v281, %v297
        %v299 = vlaneseq
        %v300 = vshrl.u32 %v299, 7
        %v301 = vsub.s32 0, %v300
        %v302 = vrot.slane %v282, %v301
        %v308 = vcombine.low %v286, %v290
        %v309 = vcombine.low %v294, %v298
        %v311 = vunpack.c.l.s4 1983009808
        %v312 = vunpack.c.0.s8 %v311
        %v313 = vlaneseq
        %v314 = vshrl.u32 %v313, 7
        %v315 = vsub.s32 %v312, %v314
        %v316 = vrot.slane %v308, %v315
        %v318 = vunpack.c.l.s4 1983009808
        %v319 = vunpack.c.0.s8 %v318
        %v320 = vlaneseq
        %v321 = vshrl.u32 %v320, 7
        %v322 = vsub.s32 %v319, %v321
        %v323 = vrot.slane %v309, %v322
        %v324 = vcombine.low %v316, %v323
        %v326 = vunpack.c.l.s4 1983009808
        %v327 = vunpack.c.0.s8 %v326
        %v328 = vlaneseq
        %v329 = vshrl.u32 %v328, 7
        %v330 = vsub.s32 %v327, %v329
        %v331 = vrot.slane %v302, %v330
        %v334 = vsub.f32 %v138, %v324
        %v335 = vsub.f32 %v139, %v331
        %v336 = vmul.f32 %v334, %v334
        %v337 = vmul.f32 %v335, %v335
        %v340 = vcombine.high %v336, %v336
        %v342 = vunpack.c.l.s4 1983009808
        %v343 = vunpack.c.0.s8 %v342
        %v344 = vlaneseq
        %v345 = vshrl.u32 %v344, 7
        %v346 = vsub.s32 %v343, %v345
        %v347 = vrot.slane %v336, %v346
        %v349 = vunpack.c.l.s4 1983009808
        %v350 = vunpack.c.0.s8 %v349
        %v351 = vlaneseq
        %v352 = vshrl.u32 %v351, 7
        %v353 = vsub.s32 %v350, %v352
        %v354 = vrot.slane %v340, %v353
        %v355 = vcombine.high %v347, %v347
        %v356 = vcombine.high %v354, %v354
        %v358 = vunpack.c.l.s4 1983009808
        %v359 = vunpack.c.0.s8 %v358
        %v360 = vlaneseq
        %v361 = vshrl.u32 %v360, 7
        %v362 = vsub.s32 %v359, %v361
        %v363 = vrot.slane %v337, %v362
        %v369 = vsel %vm171, %v347, 0.0
        %v370 = vrot.slane %v369, 4
        %v371 = vadd.f32 %v369, %v370
        %v372 = vrot.slane %v371, 2
        %v373 = vadd.f32 %v371, %v372
        %v374 = vrot.slane %v373, 1
        %v375 = vadd.f32 %v373, %v374
        %v376 = vsel %vm171, %v355, 0.0
        %v377 = vrot.slane %v376, 4
        %v378 = vadd.f32 %v376, %v377
        %v379 = vrot.slane %v378, 2
        %v380 = vadd.f32 %v378, %v379
        %v381 = vrot.slane %v380, 1
        %v382 = vadd.f32 %v380, %v381
        %v383 = vsel %vm171, %v354, 0.0
        %v384 = vrot.slane %v383, 4
        %v385 = vadd.f32 %v383, %v384
        %v386 = vrot.slane %v385, 2
        %v387 = vadd.f32 %v385, %v386
        %v388 = vrot.slane %v387, 1
        %v389 = vadd.f32 %v387, %v388
        %v390 = vsel %vm171, %v356, 0.0
        %v391 = vrot.slane %v390, 4
        %v392 = vadd.f32 %v390, %v391
        %v393 = vrot.slane %v392, 2
        %v394 = vadd.f32 %v392, %v393
        %v395 = vrot.slane %v394, 1
        %v396 = vadd.f32 %v394, %v395
        %v397 = vsel %vm171, %v363, 0.0
        %v398 = vrot.slane %v397, 4
        %v399 = vadd.f32 %v397, %v398
        %v400 = vrot.slane %v399, 2
        %v401 = vadd.f32 %v399, %v400
        %v402 = vrot.slane %v401, 1
        %v403 = vadd.f32 %v401, %v402
        %v404 = vmul.f32 %v375, %v207
        %v405 = vmul.f32 %v382, %v207
        %v406 = vmul.f32 %v389, %v207
        %v407 = vmul.f32 %v396, %v207
        %v408 = vmul.f32 %v403, %v207
        %409 = vrot.lane.b32.xlu0 %v404, 80
        %v410 = vpop.permute.xlu0 %409
        %411 = vrot.lane.b32.xlu0 %v405, 80
        %v412 = vpop.permute.xlu0 %411
        %413 = vrot.lane.b32.xlu0 %v406, 80
        %v414 = vpop.permute.xlu0 %413
        %415 = vrot.lane.b32.xlu0 %v407, 80
        %v416 = vpop.permute.xlu0 %415
        %417 = vrot.lane.b32.xlu0 %v408, 80
        %v418 = vpop.permute.xlu0 %417
        %v419 = vsel %vm225, %v416, %v418
        %v420 = vsel %vm225, %v414, %v416
        %v421 = vsel %vm225, %v412, %v414
        %v422 = vsel %vm225, %v410, %v412
        %v423 = vsel %vm225, %v418, %v410
        %v424 = vadd.f32 %v404, %v423
        %v425 = vadd.f32 %v405, %v422
        %v426 = vadd.f32 %v406, %v421
        %v427 = vadd.f32 %v407, %v420
        %v428 = vadd.f32 %v408, %v419
        %429 = vrot.lane.b32.xlu0 %v424, 32
        %v430 = vpop.permute.xlu0 %429
        %431 = vrot.lane.b32.xlu0 %v425, 32
        %v432 = vpop.permute.xlu0 %431
        %433 = vrot.lane.b32.xlu0 %v426, 32
        %v434 = vpop.permute.xlu0 %433
        %435 = vrot.lane.b32.xlu0 %v427, 32
        %v436 = vpop.permute.xlu0 %435
        %437 = vrot.lane.b32.xlu0 %v428, 32
        %v438 = vpop.permute.xlu0 %437
        %v439 = vsel %vm246, %v436, %v438
        %v440 = vsel %vm246, %v434, %v436
        %v441 = vsel %vm246, %v432, %v434
        %v442 = vsel %vm246, %v430, %v432
        %v443 = vsel %vm246, %v438, %v430
        %v444 = vadd.f32 %v424, %v439
        %v445 = vadd.f32 %v425, %v443
        %v446 = vadd.f32 %v426, %v442
        %v447 = vadd.f32 %v427, %v441
        %v448 = vadd.f32 %v428, %v440
        %449 = vrot.lane.b32.xlu0 %v444, 64
        %v450 = vpop.permute.xlu0 %449
        %451 = vrot.lane.b32.xlu0 %v445, 64
        %v452 = vpop.permute.xlu0 %451
        %453 = vrot.lane.b32.xlu0 %v446, 64
        %v454 = vpop.permute.xlu0 %453
        %455 = vrot.lane.b32.xlu0 %v447, 64
        %v456 = vpop.permute.xlu0 %455
        %457 = vrot.lane.b32.xlu0 %v448, 64
        %v458 = vpop.permute.xlu0 %457
        %v459 = vsel %vm267, %v456, %v458
        %v460 = vsel %vm267, %v454, %v456
        %v461 = vsel %vm267, %v452, %v454
        %v462 = vsel %vm267, %v450, %v452
        %v463 = vsel %vm267, %v458, %v450
        %v464 = vadd.f32 %v444, %v460
        %v465 = vadd.f32 %v445, %v459
        %v466 = vadd.f32 %v446, %v463
        %v467 = vadd.f32 %v447, %v462
        %v468 = vadd.f32 %v448, %v461
        %v469 = vmul.f32 %v464, 0.125
        %v470 = vmul.f32 %v465, 0.125
        %v471 = vmul.f32 %v466, 0.125
        %v472 = vmul.f32 %v467, 0.125
        %v473 = vmul.f32 %v468, 0.125
        %v474 = vadd.f32 %v469, 1e-05
        %v475 = vadd.f32 %v470, 1e-05
        %v476 = vadd.f32 %v471, 1e-05
        %v477 = vadd.f32 %v472, 1e-05
        %v478 = vadd.f32 %v473, 1e-05
        %v479 = vrsqrt.pop %v474
        %v480 = vrsqrt.pop %v475
        %v481 = vrsqrt.pop %v476
        %v482 = vrsqrt.pop %v477
        %v483 = vrsqrt.pop %v478
        %v484 = vlaneseq
        %v485 = vshrl.u32 %v484, 7
        %v486 = vsub.s32 0, %v485
        %v487 = vrot.slane %v479, %v486
        %v488 = vlaneseq
        %v489 = vshrl.u32 %v488, 7
        %v490 = vsub.s32 0, %v489
        %v491 = vrot.slane %v480, %v490
        %v492 = vlaneseq
        %v493 = vshrl.u32 %v492, 7
        %v494 = vsub.s32 0, %v493
        %v495 = vrot.slane %v481, %v494
        %v496 = vlaneseq
        %v497 = vshrl.u32 %v496, 7
        %v498 = vsub.s32 0, %v497
        %v499 = vrot.slane %v482, %v498
        %v500 = vlaneseq
        %v501 = vshrl.u32 %v500, 7
        %v502 = vsub.s32 0, %v501
        %v503 = vrot.slane %v483, %v502
        %v509 = vcombine.low %v487, %v491
        %v510 = vcombine.low %v495, %v499
        %v512 = vunpack.c.l.s4 1983009808
        %v513 = vunpack.c.0.s8 %v512
        %v514 = vlaneseq
        %v515 = vshrl.u32 %v514, 7
        %v516 = vsub.s32 %v513, %v515
        %v517 = vrot.slane %v509, %v516
        %v519 = vunpack.c.l.s4 1983009808
        %v520 = vunpack.c.0.s8 %v519
        %v521 = vlaneseq
        %v522 = vshrl.u32 %v521, 7
        %v523 = vsub.s32 %v520, %v522
        %v524 = vrot.slane %v510, %v523
        %v525 = vcombine.low %v517, %v524
        %v527 = vunpack.c.l.s4 1983009808
        %v528 = vunpack.c.0.s8 %v527
        %v529 = vlaneseq
        %v530 = vshrl.u32 %v529, 7
        %v531 = vsub.s32 %v528, %v530
        %v532 = vrot.slane %v503, %v531
        %v535 = vmul.f32 %v334, %v525
        %v536 = vmul.f32 %v335, %v532
        %537 = vst [vmem:[%s135] sm:$0xff] %v535
        %538 = vst [vmem:[%s135 + $0x8] sm:$0x3] %v536
        %s539 = scalar_lea.vmem %s117, 10 [#allocation2]
        %v540 = vld [vmem:[%s539] sm:$0xff]
        %v541 = vld [vmem:[%s539 + $0x8] sm:$0x3]
        %v544 = vcombine.high %v540, %v540
        %v546 = vunpack.c.l.s4 1983009808
        %v547 = vunpack.c.0.s8 %v546
        %v548 = vlaneseq
        %v549 = vshrl.u32 %v548, 7
        %v550 = vsub.s32 %v547, %v549
        %v551 = vrot.slane %v540, %v550
        %v553 = vunpack.c.l.s4 1983009808
        %v554 = vunpack.c.0.s8 %v553
        %v555 = vlaneseq
        %v556 = vshrl.u32 %v555, 7
        %v557 = vsub.s32 %v554, %v556
        %v558 = vrot.slane %v544, %v557
        %v559 = vcombine.high %v551, %v551
        %v560 = vcombine.high %v558, %v558
        %v562 = vunpack.c.l.s4 1983009808
        %v563 = vunpack.c.0.s8 %v562
        %v564 = vlaneseq
        %v565 = vshrl.u32 %v564, 7
        %v566 = vsub.s32 %v563, %v565
        %v567 = vrot.slane %v541, %v566
        %v573 = vsel %vm171, %v551, 0.0
        %v574 = vrot.slane %v573, 4
        %v575 = vadd.f32 %v573, %v574
        %v576 = vrot.slane %v575, 2
        %v577 = vadd.f32 %v575, %v576
        %v578 = vrot.slane %v577, 1
        %v579 = vadd.f32 %v577, %v578
        %v580 = vsel %vm171, %v559, 0.0
        %v581 = vrot.slane %v580, 4
        %v582 = vadd.f32 %v580, %v581
        %v583 = vrot.slane %v582, 2
        %v584 = vadd.f32 %v582, %v583
        %v585 = vrot.slane %v584, 1
        %v586 = vadd.f32 %v584, %v585
        %v587 = vsel %vm171, %v558, 0.0
        %v588 = vrot.slane %v587, 4
        %v589 = vadd.f32 %v587, %v588
        %v590 = vrot.slane %v589, 2
        %v591 = vadd.f32 %v589, %v590
        %v592 = vrot.slane %v591, 1
        %v593 = vadd.f32 %v591, %v592
        %v594 = vsel %vm171, %v560, 0.0
        %v595 = vrot.slane %v594, 4
        %v596 = vadd.f32 %v594, %v595
        %v597 = vrot.slane %v596, 2
        %v598 = vadd.f32 %v596, %v597
        %v599 = vrot.slane %v598, 1
        %v600 = vadd.f32 %v598, %v599
        %v601 = vsel %vm171, %v567, 0.0
        %v602 = vrot.slane %v601, 4
        %v603 = vadd.f32 %v601, %v602
        %v604 = vrot.slane %v603, 2
        %v605 = vadd.f32 %v603, %v604
        %v606 = vrot.slane %v605, 1
        %v607 = vadd.f32 %v605, %v606
        %v608 = vmul.f32 %v579, %v207
        %v609 = vmul.f32 %v586, %v207
        %v610 = vmul.f32 %v593, %v207
        %v611 = vmul.f32 %v600, %v207
        %v612 = vmul.f32 %v607, %v207
        %613 = vrot.lane.b32.xlu0 %v608, 80
        %v614 = vpop.permute.xlu0 %613
        %615 = vrot.lane.b32.xlu0 %v609, 80
        %v616 = vpop.permute.xlu0 %615
        %617 = vrot.lane.b32.xlu0 %v610, 80
        %v618 = vpop.permute.xlu0 %617
        %619 = vrot.lane.b32.xlu0 %v611, 80
        %v620 = vpop.permute.xlu0 %619
        %621 = vrot.lane.b32.xlu0 %v612, 80
        %v622 = vpop.permute.xlu0 %621
        %v623 = vsel %vm225, %v620, %v622
        %v624 = vsel %vm225, %v618, %v620
        %v625 = vsel %vm225, %v616, %v618
        %v626 = vsel %vm225, %v614, %v616
        %v627 = vsel %vm225, %v622, %v614
        %v628 = vadd.f32 %v608, %v627
        %v629 = vadd.f32 %v609, %v626
        %v630 = vadd.f32 %v610, %v625
        %v631 = vadd.f32 %v611, %v624
        %v632 = vadd.f32 %v612, %v623
        %633 = vrot.lane.b32.xlu0 %v628, 32
        %v634 = vpop.permute.xlu0 %633
        %635 = vrot.lane.b32.xlu0 %v629, 32
        %v636 = vpop.permute.xlu0 %635
        %637 = vrot.lane.b32.xlu0 %v630, 32
        %v638 = vpop.permute.xlu0 %637
        %639 = vrot.lane.b32.xlu0 %v631, 32
        %v640 = vpop.permute.xlu0 %639
        %641 = vrot.lane.b32.xlu0 %v632, 32
        %v642 = vpop.permute.xlu0 %641
        %v643 = vsel %vm246, %v640, %v642
        %v644 = vsel %vm246, %v638, %v640
        %v645 = vsel %vm246, %v636, %v638
        %v646 = vsel %vm246, %v634, %v636
        %v647 = vsel %vm246, %v642, %v634
        %v648 = vadd.f32 %v628, %v643
        %v649 = vadd.f32 %v629, %v647
        %v650 = vadd.f32 %v630, %v646
        %v651 = vadd.f32 %v631, %v645
        %v652 = vadd.f32 %v632, %v644
        %653 = vrot.lane.b32.xlu0 %v648, 64
        %v654 = vpop.permute.xlu0 %653
        %655 = vrot.lane.b32.xlu0 %v649, 64
        %v656 = vpop.permute.xlu0 %655
        %657 = vrot.lane.b32.xlu0 %v650, 64
        %v658 = vpop.permute.xlu0 %657
        %659 = vrot.lane.b32.xlu0 %v651, 64
        %v660 = vpop.permute.xlu0 %659
        %661 = vrot.lane.b32.xlu0 %v652, 64
        %v662 = vpop.permute.xlu0 %661
        %v663 = vsel %vm267, %v660, %v662
        %v664 = vsel %vm267, %v658, %v660
        %v665 = vsel %vm267, %v656, %v658
        %v666 = vsel %vm267, %v654, %v656
        %v667 = vsel %vm267, %v662, %v654
        %v668 = vadd.f32 %v648, %v664
        %v669 = vadd.f32 %v649, %v663
        %v670 = vadd.f32 %v650, %v667
        %v671 = vadd.f32 %v651, %v666
        %v672 = vadd.f32 %v652, %v665
        %v673 = vmul.f32 %v668, 0.125
        %v674 = vmul.f32 %v669, 0.125
        %v675 = vmul.f32 %v670, 0.125
        %v676 = vmul.f32 %v671, 0.125
        %v677 = vmul.f32 %v672, 0.125
        %v678 = vlaneseq
        %v679 = vshrl.u32 %v678, 7
        %v680 = vsub.s32 0, %v679
        %v681 = vrot.slane %v673, %v680
        %v682 = vlaneseq
        %v683 = vshrl.u32 %v682, 7
        %v684 = vsub.s32 0, %v683
        %v685 = vrot.slane %v674, %v684
        %v686 = vlaneseq
        %v687 = vshrl.u32 %v686, 7
        %v688 = vsub.s32 0, %v687
        %v689 = vrot.slane %v675, %v688
        %v690 = vlaneseq
        %v691 = vshrl.u32 %v690, 7
        %v692 = vsub.s32 0, %v691
        %v693 = vrot.slane %v676, %v692
        %v694 = vlaneseq
        %v695 = vshrl.u32 %v694, 7
        %v696 = vsub.s32 0, %v695
        %v697 = vrot.slane %v677, %v696
        %v703 = vcombine.low %v681, %v685
        %v704 = vcombine.low %v689, %v693
        %v706 = vunpack.c.l.s4 1983009808
        %v707 = vunpack.c.0.s8 %v706
        %v708 = vlaneseq
        %v709 = vshrl.u32 %v708, 7
        %v710 = vsub.s32 %v707, %v709
        %v711 = vrot.slane %v703, %v710
        %v713 = vunpack.c.l.s4 1983009808
        %v714 = vunpack.c.0.s8 %v713
        %v715 = vlaneseq
        %v716 = vshrl.u32 %v715, 7
        %v717 = vsub.s32 %v714, %v716
        %v718 = vrot.slane %v704, %v717
        %v719 = vcombine.low %v711, %v718
        %v721 = vunpack.c.l.s4 1983009808
        %v722 = vunpack.c.0.s8 %v721
        %v723 = vlaneseq
        %v724 = vshrl.u32 %v723, 7
        %v725 = vsub.s32 %v722, %v724
        %v726 = vrot.slane %v697, %v725
        %v729 = vsub.f32 %v540, %v719
        %v730 = vsub.f32 %v541, %v726
        %v731 = vmul.f32 %v729, %v729
        %v732 = vmul.f32 %v730, %v730
        %v735 = vcombine.high %v731, %v731
        %v737 = vunpack.c.l.s4 1983009808
        %v738 = vunpack.c.0.s8 %v737
        %v739 = vlaneseq
        %v740 = vshrl.u32 %v739, 7
        %v741 = vsub.s32 %v738, %v740
        %v742 = vrot.slane %v731, %v741
        %v744 = vunpack.c.l.s4 1983009808
        %v745 = vunpack.c.0.s8 %v744
        %v746 = vlaneseq
        %v747 = vshrl.u32 %v746, 7
        %v748 = vsub.s32 %v745, %v747
        %v749 = vrot.slane %v735, %v748
        %v750 = vcombine.high %v742, %v742
        %v751 = vcombine.high %v749, %v749
        %v753 = vunpack.c.l.s4 1983009808
        %v754 = vunpack.c.0.s8 %v753
        %v755 = vlaneseq
        %v756 = vshrl.u32 %v755, 7
        %v757 = vsub.s32 %v754, %v756
        %v758 = vrot.slane %v732, %v757
        %v764 = vsel %vm171, %v742, 0.0
        %v765 = vrot.slane %v764, 4
        %v766 = vadd.f32 %v764, %v765
        %v767 = vrot.slane %v766, 2
        %v768 = vadd.f32 %v766, %v767
        %v769 = vrot.slane %v768, 1
        %v770 = vadd.f32 %v768, %v769
        %v771 = vsel %vm171, %v750, 0.0
        %v772 = vrot.slane %v771, 4
        %v773 = vadd.f32 %v771, %v772
        %v774 = vrot.slane %v773, 2
        %v775 = vadd.f32 %v773, %v774
        %v776 = vrot.slane %v775, 1
        %v777 = vadd.f32 %v775, %v776
        %v778 = vsel %vm171, %v749, 0.0
        %v779 = vrot.slane %v778, 4
        %v780 = vadd.f32 %v778, %v779
        %v781 = vrot.slane %v780, 2
        %v782 = vadd.f32 %v780, %v781
        %v783 = vrot.slane %v782, 1
        %v784 = vadd.f32 %v782, %v783
        %v785 = vsel %vm171, %v751, 0.0
        %v786 = vrot.slane %v785, 4
        %v787 = vadd.f32 %v785, %v786
        %v788 = vrot.slane %v787, 2
        %v789 = vadd.f32 %v787, %v788
        %v790 = vrot.slane %v789, 1
        %v791 = vadd.f32 %v789, %v790
        %v792 = vsel %vm171, %v758, 0.0
        %v793 = vrot.slane %v792, 4
        %v794 = vadd.f32 %v792, %v793
        %v795 = vrot.slane %v794, 2
        %v796 = vadd.f32 %v794, %v795
        %v797 = vrot.slane %v796, 1
        %v798 = vadd.f32 %v796, %v797
        %v799 = vmul.f32 %v770, %v207
        %v800 = vmul.f32 %v777, %v207
        %v801 = vmul.f32 %v784, %v207
        %v802 = vmul.f32 %v791, %v207
        %v803 = vmul.f32 %v798, %v207
        %804 = vrot.lane.b32.xlu0 %v799, 80
        %v805 = vpop.permute.xlu0 %804
        %806 = vrot.lane.b32.xlu0 %v800, 80
        %v807 = vpop.permute.xlu0 %806
        %808 = vrot.lane.b32.xlu0 %v801, 80
        %v809 = vpop.permute.xlu0 %808
        %810 = vrot.lane.b32.xlu0 %v802, 80
        %v811 = vpop.permute.xlu0 %810
        %812 = vrot.lane.b32.xlu0 %v803, 80
        %v813 = vpop.permute.xlu0 %812
        %v814 = vsel %vm225, %v811, %v813
        %v815 = vsel %vm225, %v809, %v811
        %v816 = vsel %vm225, %v807, %v809
        %v817 = vsel %vm225, %v805, %v807
        %v818 = vsel %vm225, %v813, %v805
        %v819 = vadd.f32 %v799, %v818
        %v820 = vadd.f32 %v800, %v817
        %v821 = vadd.f32 %v801, %v816
        %v822 = vadd.f32 %v802, %v815
        %v823 = vadd.f32 %v803, %v814
        %824 = vrot.lane.b32.xlu0 %v819, 32
        %v825 = vpop.permute.xlu0 %824
        %826 = vrot.lane.b32.xlu0 %v820, 32
        %v827 = vpop.permute.xlu0 %826
        %828 = vrot.lane.b32.xlu0 %v821, 32
        %v829 = vpop.permute.xlu0 %828
        %830 = vrot.lane.b32.xlu0 %v822, 32
        %v831 = vpop.permute.xlu0 %830
        %832 = vrot.lane.b32.xlu0 %v823, 32
        %v833 = vpop.permute.xlu0 %832
        %v834 = vsel %vm246, %v831, %v833
        %v835 = vsel %vm246, %v829, %v831
        %v836 = vsel %vm246, %v827, %v829
        %v837 = vsel %vm246, %v825, %v827
        %v838 = vsel %vm246, %v833, %v825
        %v839 = vadd.f32 %v819, %v834
        %v840 = vadd.f32 %v820, %v838
        %v841 = vadd.f32 %v821, %v837
        %v842 = vadd.f32 %v822, %v836
        %v843 = vadd.f32 %v823, %v835
        %844 = vrot.lane.b32.xlu0 %v839, 64
        %v845 = vpop.permute.xlu0 %844
        %846 = vrot.lane.b32.xlu0 %v840, 64
        %v847 = vpop.permute.xlu0 %846
        %848 = vrot.lane.b32.xlu0 %v841, 64
        %v849 = vpop.permute.xlu0 %848
        %850 = vrot.lane.b32.xlu0 %v842, 64
        %v851 = vpop.permute.xlu0 %850
        %852 = vrot.lane.b32.xlu0 %v843, 64
        %v853 = vpop.permute.xlu0 %852
        %v854 = vsel %vm267, %v851, %v853
        %v855 = vsel %vm267, %v849, %v851
        %v856 = vsel %vm267, %v847, %v849
        %v857 = vsel %vm267, %v845, %v847
        %v858 = vsel %vm267, %v853, %v845
        %v859 = vadd.f32 %v839, %v855
        %v860 = vadd.f32 %v840, %v854
        %v861 = vadd.f32 %v841, %v858
        %v862 = vadd.f32 %v842, %v857
        %v863 = vadd.f32 %v843, %v856
        %v864 = vmul.f32 %v859, 0.125
        %v865 = vmul.f32 %v860, 0.125
        %v866 = vmul.f32 %v861, 0.125
        %v867 = vmul.f32 %v862, 0.125
        %v868 = vmul.f32 %v863, 0.125
        %v869 = vadd.f32 %v864, 1e-05
        %v870 = vadd.f32 %v865, 1e-05
        %v871 = vadd.f32 %v866, 1e-05
        %v872 = vadd.f32 %v867, 1e-05
        %v873 = vadd.f32 %v868, 1e-05
        %v874 = vrsqrt.pop %v869
        %v875 = vrsqrt.pop %v870
        %v876 = vrsqrt.pop %v871
        %v877 = vrsqrt.pop %v872
        %v878 = vrsqrt.pop %v873
        %v879 = vlaneseq
        %v880 = vshrl.u32 %v879, 7
        %v881 = vsub.s32 0, %v880
        %v882 = vrot.slane %v874, %v881
        %v883 = vlaneseq
        %v884 = vshrl.u32 %v883, 7
        %v885 = vsub.s32 0, %v884
        %v886 = vrot.slane %v875, %v885
        %v887 = vlaneseq
        %v888 = vshrl.u32 %v887, 7
        %v889 = vsub.s32 0, %v888
        %v890 = vrot.slane %v876, %v889
        %v891 = vlaneseq
        %v892 = vshrl.u32 %v891, 7
        %v893 = vsub.s32 0, %v892
        %v894 = vrot.slane %v877, %v893
        %v895 = vlaneseq
        %v896 = vshrl.u32 %v895, 7
        %v897 = vsub.s32 0, %v896
        %v898 = vrot.slane %v878, %v897
        %v904 = vcombine.low %v882, %v886
        %v905 = vcombine.low %v890, %v894
        %v907 = vunpack.c.l.s4 1983009808
        %v908 = vunpack.c.0.s8 %v907
        %v909 = vlaneseq
        %v910 = vshrl.u32 %v909, 7
        %v911 = vsub.s32 %v908, %v910
        %v912 = vrot.slane %v904, %v911
        %v914 = vunpack.c.l.s4 1983009808
        %v915 = vunpack.c.0.s8 %v914
        %v916 = vlaneseq
        %v917 = vshrl.u32 %v916, 7
        %v918 = vsub.s32 %v915, %v917
        %v919 = vrot.slane %v905, %v918
        %v920 = vcombine.low %v912, %v919
        %v922 = vunpack.c.l.s4 1983009808
        %v923 = vunpack.c.0.s8 %v922
        %v924 = vlaneseq
        %v925 = vshrl.u32 %v924, 7
        %v926 = vsub.s32 %v923, %v925
        %v927 = vrot.slane %v898, %v926
        %v930 = vmul.f32 %v729, %v920
        %v931 = vmul.f32 %v730, %v927
        %s932 = scalar_lea.vmem %s135, 10 [#allocation5]
        %933 = vst [vmem:[%s932] sm:$0xff] %v930
        %934 = vst [vmem:[%s932 + $0x8] sm:$0x3] %v931
        %s935 = scalar_lea.vmem %s117, 20 [#allocation2]
        %v936 = vld [vmem:[%s935] sm:$0xff]
        %v937 = vld [vmem:[%s935 + $0x8] sm:$0x3]
        %v940 = vcombine.high %v936, %v936
        %v942 = vunpack.c.l.s4 1983009808
        %v943 = vunpack.c.0.s8 %v942
        %v944 = vlaneseq
        %v945 = vshrl.u32 %v944, 7
        %v946 = vsub.s32 %v943, %v945
        %v947 = vrot.slane %v936, %v946
        %v949 = vunpack.c.l.s4 1983009808
        %v950 = vunpack.c.0.s8 %v949
        %v951 = vlaneseq
        %v952 = vshrl.u32 %v951, 7
        %v953 = vsub.s32 %v950, %v952
        %v954 = vrot.slane %v940, %v953
        %v955 = vcombine.high %v947, %v947
        %v956 = vcombine.high %v954, %v954
        %v958 = vunpack.c.l.s4 1983009808
        %v959 = vunpack.c.0.s8 %v958
        %v960 = vlaneseq
        %v961 = vshrl.u32 %v960, 7
        %v962 = vsub.s32 %v959, %v961
        %v963 = vrot.slane %v937, %v962
        %v969 = vsel %vm171, %v947, 0.0
        %v970 = vrot.slane %v969, 4
        %v971 = vadd.f32 %v969, %v970
        %v972 = vrot.slane %v971, 2
        %v973 = vadd.f32 %v971, %v972
        %v974 = vrot.slane %v973, 1
        %v975 = vadd.f32 %v973, %v974
        %v976 = vsel %vm171, %v955, 0.0
        %v977 = vrot.slane %v976, 4
        %v978 = vadd.f32 %v976, %v977
        %v979 = vrot.slane %v978, 2
        %v980 = vadd.f32 %v978, %v979
        %v981 = vrot.slane %v980, 1
        %v982 = vadd.f32 %v980, %v981
        %v983 = vsel %vm171, %v954, 0.0
        %v984 = vrot.slane %v983, 4
        %v985 = vadd.f32 %v983, %v984
        %v986 = vrot.slane %v985, 2
        %v987 = vadd.f32 %v985, %v986
        %v988 = vrot.slane %v987, 1
        %v989 = vadd.f32 %v987, %v988
        %v990 = vsel %vm171, %v956, 0.0
        %v991 = vrot.slane %v990, 4
        %v992 = vadd.f32 %v990, %v991
        %v993 = vrot.slane %v992, 2
        %v994 = vadd.f32 %v992, %v993
        %v995 = vrot.slane %v994, 1
        %v996 = vadd.f32 %v994, %v995
        %v997 = vsel %vm171, %v963, 0.0
        %v998 = vrot.slane %v997, 4
        %v999 = vadd.f32 %v997, %v998
        %v1000 = vrot.slane %v999, 2
        %v1001 = vadd.f32 %v999, %v1000
        %v1002 = vrot.slane %v1001, 1
        %v1003 = vadd.f32 %v1001, %v1002
        %v1004 = vmul.f32 %v975, %v207
        %v1005 = vmul.f32 %v982, %v207
        %v1006 = vmul.f32 %v989, %v207
        %v1007 = vmul.f32 %v996, %v207
        %v1008 = vmul.f32 %v1003, %v207
        %1009 = vrot.lane.b32.xlu0 %v1004, 80
        %v1010 = vpop.permute.xlu0 %1009
        %1011 = vrot.lane.b32.xlu0 %v1005, 80
        %v1012 = vpop.permute.xlu0 %1011
        %1013 = vrot.lane.b32.xlu0 %v1006, 80
        %v1014 = vpop.permute.xlu0 %1013
        %1015 = vrot.lane.b32.xlu0 %v1007, 80
        %v1016 = vpop.permute.xlu0 %1015
        %1017 = vrot.lane.b32.xlu0 %v1008, 80
        %v1018 = vpop.permute.xlu0 %1017
        %v1019 = vsel %vm225, %v1016, %v1018
        %v1020 = vsel %vm225, %v1014, %v1016
        %v1021 = vsel %vm225, %v1012, %v1014
        %v1022 = vsel %vm225, %v1010, %v1012
        %v1023 = vsel %vm225, %v1018, %v1010
        %v1024 = vadd.f32 %v1004, %v1023
        %v1025 = vadd.f32 %v1005, %v1022
        %v1026 = vadd.f32 %v1006, %v1021
        %v1027 = vadd.f32 %v1007, %v1020
        %v1028 = vadd.f32 %v1008, %v1019
        %1029 = vrot.lane.b32.xlu0 %v1024, 32
        %v1030 = vpop.permute.xlu0 %1029
        %1031 = vrot.lane.b32.xlu0 %v1025, 32
        %v1032 = vpop.permute.xlu0 %1031
        %1033 = vrot.lane.b32.xlu0 %v1026, 32
        %v1034 = vpop.permute.xlu0 %1033
        %1035 = vrot.lane.b32.xlu0 %v1027, 32
        %v1036 = vpop.permute.xlu0 %1035
        %1037 = vrot.lane.b32.xlu0 %v1028, 32
        %v1038 = vpop.permute.xlu0 %1037
        %v1039 = vsel %vm246, %v1036, %v1038
        %v1040 = vsel %vm246, %v1034, %v1036
        %v1041 = vsel %vm246, %v1032, %v1034
        %v1042 = vsel %vm246, %v1030, %v1032
        %v1043 = vsel %vm246, %v1038, %v1030
        %v1044 = vadd.f32 %v1024, %v1039
        %v1045 = vadd.f32 %v1025, %v1043
        %v1046 = vadd.f32 %v1026, %v1042
        %v1047 = vadd.f32 %v1027, %v1041
        %v1048 = vadd.f32 %v1028, %v1040
        %1049 = vrot.lane.b32.xlu0 %v1044, 64
        %v1050 = vpop.permute.xlu0 %1049
        %1051 = vrot.lane.b32.xlu0 %v1045, 64
        %v1052 = vpop.permute.xlu0 %1051
        %1053 = vrot.lane.b32.xlu0 %v1046, 64
        %v1054 = vpop.permute.xlu0 %1053
        %1055 = vrot.lane.b32.xlu0 %v1047, 64
        %v1056 = vpop.permute.xlu0 %1055
        %1057 = vrot.lane.b32.xlu0 %v1048, 64
        %v1058 = vpop.permute.xlu0 %1057
        %v1059 = vsel %vm267, %v1056, %v1058
        %v1060 = vsel %vm267, %v1054, %v1056
        %v1061 = vsel %vm267, %v1052, %v1054
        %v1062 = vsel %vm267, %v1050, %v1052
        %v1063 = vsel %vm267, %v1058, %v1050
        %v1064 = vadd.f32 %v1044, %v1060
        %v1065 = vadd.f32 %v1045, %v1059
        %v1066 = vadd.f32 %v1046, %v1063
        %v1067 = vadd.f32 %v1047, %v1062
        %v1068 = vadd.f32 %v1048, %v1061
        %v1069 = vmul.f32 %v1064, 0.125
        %v1070 = vmul.f32 %v1065, 0.125
        %v1071 = vmul.f32 %v1066, 0.125
        %v1072 = vmul.f32 %v1067, 0.125
        %v1073 = vmul.f32 %v1068, 0.125
        %v1074 = vlaneseq
        %v1075 = vshrl.u32 %v1074, 7
        %v1076 = vsub.s32 0, %v1075
        %v1077 = vrot.slane %v1069, %v1076
        %v1078 = vlaneseq
        %v1079 = vshrl.u32 %v1078, 7
        %v1080 = vsub.s32 0, %v1079
        %v1081 = vrot.slane %v1070, %v1080
        %v1082 = vlaneseq
        %v1083 = vshrl.u32 %v1082, 7
        %v1084 = vsub.s32 0, %v1083
        %v1085 = vrot.slane %v1071, %v1084
        %v1086 = vlaneseq
        %v1087 = vshrl.u32 %v1086, 7
        %v1088 = vsub.s32 0, %v1087
        %v1089 = vrot.slane %v1072, %v1088
        %v1090 = vlaneseq
        %v1091 = vshrl.u32 %v1090, 7
        %v1092 = vsub.s32 0, %v1091
        %v1093 = vrot.slane %v1073, %v1092
        %v1099 = vcombine.low %v1077, %v1081
        %v1100 = vcombine.low %v1085, %v1089
        %v1102 = vunpack.c.l.s4 1983009808
        %v1103 = vunpack.c.0.s8 %v1102
        %v1104 = vlaneseq
        %v1105 = vshrl.u32 %v1104, 7
        %v1106 = vsub.s32 %v1103, %v1105
        %v1107 = vrot.slane %v1099, %v1106
        %v1109 = vunpack.c.l.s4 1983009808
        %v1110 = vunpack.c.0.s8 %v1109
        %v1111 = vlaneseq
        %v1112 = vshrl.u32 %v1111, 7
        %v1113 = vsub.s32 %v1110, %v1112
        %v1114 = vrot.slane %v1100, %v1113
        %v1115 = vcombine.low %v1107, %v1114
        %v1117 = vunpack.c.l.s4 1983009808
        %v1118 = vunpack.c.0.s8 %v1117
        %v1119 = vlaneseq
        %v1120 = vshrl.u32 %v1119, 7
        %v1121 = vsub.s32 %v1118, %v1120
        %v1122 = vrot.slane %v1093, %v1121
        %v1125 = vsub.f32 %v936, %v1115
        %v1126 = vsub.f32 %v937, %v1122
        %v1127 = vmul.f32 %v1125, %v1125
        %v1128 = vmul.f32 %v1126, %v1126
        %v1131 = vcombine.high %v1127, %v1127
        %v1133 = vunpack.c.l.s4 1983009808
        %v1134 = vunpack.c.0.s8 %v1133
        %v1135 = vlaneseq
        %v1136 = vshrl.u32 %v1135, 7
        %v1137 = vsub.s32 %v1134, %v1136
        %v1138 = vrot.slane %v1127, %v1137
        %v1140 = vunpack.c.l.s4 1983009808
        %v1141 = vunpack.c.0.s8 %v1140
        %v1142 = vlaneseq
        %v1143 = vshrl.u32 %v1142, 7
        %v1144 = vsub.s32 %v1141, %v1143
        %v1145 = vrot.slane %v1131, %v1144
        %v1146 = vcombine.high %v1138, %v1138
        %v1147 = vcombine.high %v1145, %v1145
        %v1149 = vunpack.c.l.s4 1983009808
        %v1150 = vunpack.c.0.s8 %v1149
        %v1151 = vlaneseq
        %v1152 = vshrl.u32 %v1151, 7
        %v1153 = vsub.s32 %v1150, %v1152
        %v1154 = vrot.slane %v1128, %v1153
        %v1160 = vsel %vm171, %v1138, 0.0
        %v1161 = vrot.slane %v1160, 4
        %v1162 = vadd.f32 %v1160, %v1161
        %v1163 = vrot.slane %v1162, 2
        %v1164 = vadd.f32 %v1162, %v1163
        %v1165 = vrot.slane %v1164, 1
        %v1166 = vadd.f32 %v1164, %v1165
        %v1167 = vsel %vm171, %v1146, 0.0
        %v1168 = vrot.slane %v1167, 4
        %v1169 = vadd.f32 %v1167, %v1168
        %v1170 = vrot.slane %v1169, 2
        %v1171 = vadd.f32 %v1169, %v1170
        %v1172 = vrot.slane %v1171, 1
        %v1173 = vadd.f32 %v1171, %v1172
        %v1174 = vsel %vm171, %v1145, 0.0
        %v1175 = vrot.slane %v1174, 4
        %v1176 = vadd.f32 %v1174, %v1175
        %v1177 = vrot.slane %v1176, 2
        %v1178 = vadd.f32 %v1176, %v1177
        %v1179 = vrot.slane %v1178, 1
        %v1180 = vadd.f32 %v1178, %v1179
        %v1181 = vsel %vm171, %v1147, 0.0
        %v1182 = vrot.slane %v1181, 4
        %v1183 = vadd.f32 %v1181, %v1182
        %v1184 = vrot.slane %v1183, 2
        %v1185 = vadd.f32 %v1183, %v1184
        %v1186 = vrot.slane %v1185, 1
        %v1187 = vadd.f32 %v1185, %v1186
        %v1188 = vsel %vm171, %v1154, 0.0
        %v1189 = vrot.slane %v1188, 4
        %v1190 = vadd.f32 %v1188, %v1189
        %v1191 = vrot.slane %v1190, 2
        %v1192 = vadd.f32 %v1190, %v1191
        %v1193 = vrot.slane %v1192, 1
        %v1194 = vadd.f32 %v1192, %v1193
        %v1195 = vmul.f32 %v1166, %v207
        %v1196 = vmul.f32 %v1173, %v207
        %v1197 = vmul.f32 %v1180, %v207
        %v1198 = vmul.f32 %v1187, %v207
        %v1199 = vmul.f32 %v1194, %v207
        %1200 = vrot.lane.b32.xlu0 %v1195, 80
        %v1201 = vpop.permute.xlu0 %1200
        %1202 = vrot.lane.b32.xlu0 %v1196, 80
        %v1203 = vpop.permute.xlu0 %1202
        %1204 = vrot.lane.b32.xlu0 %v1197, 80
        %v1205 = vpop.permute.xlu0 %1204
        %1206 = vrot.lane.b32.xlu0 %v1198, 80
        %v1207 = vpop.permute.xlu0 %1206
        %1208 = vrot.lane.b32.xlu0 %v1199, 80
        %v1209 = vpop.permute.xlu0 %1208
        %v1210 = vsel %vm225, %v1207, %v1209
        %v1211 = vsel %vm225, %v1205, %v1207
        %v1212 = vsel %vm225, %v1203, %v1205
        %v1213 = vsel %vm225, %v1201, %v1203
        %v1214 = vsel %vm225, %v1209, %v1201
        %v1215 = vadd.f32 %v1195, %v1214
        %v1216 = vadd.f32 %v1196, %v1213
        %v1217 = vadd.f32 %v1197, %v1212
        %v1218 = vadd.f32 %v1198, %v1211
        %v1219 = vadd.f32 %v1199, %v1210
        %1220 = vrot.lane.b32.xlu0 %v1215, 32
        %v1221 = vpop.permute.xlu0 %1220
        %1222 = vrot.lane.b32.xlu0 %v1216, 32
        %v1223 = vpop.permute.xlu0 %1222
        %1224 = vrot.lane.b32.xlu0 %v1217, 32
        %v1225 = vpop.permute.xlu0 %1224
        %1226 = vrot.lane.b32.xlu0 %v1218, 32
        %v1227 = vpop.permute.xlu0 %1226
        %1228 = vrot.lane.b32.xlu0 %v1219, 32
        %v1229 = vpop.permute.xlu0 %1228
        %v1230 = vsel %vm246, %v1227, %v1229
        %v1231 = vsel %vm246, %v1225, %v1227
        %v1232 = vsel %vm246, %v1223, %v1225
        %v1233 = vsel %vm246, %v1221, %v1223
        %v1234 = vsel %vm246, %v1229, %v1221
        %v1235 = vadd.f32 %v1215, %v1230
        %v1236 = vadd.f32 %v1216, %v1234
        %v1237 = vadd.f32 %v1217, %v1233
        %v1238 = vadd.f32 %v1218, %v1232
        %v1239 = vadd.f32 %v1219, %v1231
        %1240 = vrot.lane.b32.xlu0 %v1235, 64
        %v1241 = vpop.permute.xlu0 %1240
        %1242 = vrot.lane.b32.xlu0 %v1236, 64
        %v1243 = vpop.permute.xlu0 %1242
        %1244 = vrot.lane.b32.xlu0 %v1237, 64
        %v1245 = vpop.permute.xlu0 %1244
        %1246 = vrot.lane.b32.xlu0 %v1238, 64
        %v1247 = vpop.permute.xlu0 %1246
        %1248 = vrot.lane.b32.xlu0 %v1239, 64
        %v1249 = vpop.permute.xlu0 %1248
        %v1250 = vsel %vm267, %v1247, %v1249
        %v1251 = vsel %vm267, %v1245, %v1247
        %v1252 = vsel %vm267, %v1243, %v1245
        %v1253 = vsel %vm267, %v1241, %v1243
        %v1254 = vsel %vm267, %v1249, %v1241
        %v1255 = vadd.f32 %v1235, %v1251
        %v1256 = vadd.f32 %v1236, %v1250
        %v1257 = vadd.f32 %v1237, %v1254
        %v1258 = vadd.f32 %v1238, %v1253
        %v1259 = vadd.f32 %v1239, %v1252
        %v1260 = vmul.f32 %v1255, 0.125
        %v1261 = vmul.f32 %v1256, 0.125
        %v1262 = vmul.f32 %v1257, 0.125
        %v1263 = vmul.f32 %v1258, 0.125
        %v1264 = vmul.f32 %v1259, 0.125
        %v1265 = vadd.f32 %v1260, 1e-05
        %v1266 = vadd.f32 %v1261, 1e-05
        %v1267 = vadd.f32 %v1262, 1e-05
        %v1268 = vadd.f32 %v1263, 1e-05
        %v1269 = vadd.f32 %v1264, 1e-05
        %v1270 = vrsqrt.pop %v1265
        %v1271 = vrsqrt.pop %v1266
        %v1272 = vrsqrt.pop %v1267
        %v1273 = vrsqrt.pop %v1268
        %v1274 = vrsqrt.pop %v1269
        %v1275 = vlaneseq
        %v1276 = vshrl.u32 %v1275, 7
        %v1277 = vsub.s32 0, %v1276
        %v1278 = vrot.slane %v1270, %v1277
        %v1279 = vlaneseq
        %v1280 = vshrl.u32 %v1279, 7
        %v1281 = vsub.s32 0, %v1280
        %v1282 = vrot.slane %v1271, %v1281
        %v1283 = vlaneseq
        %v1284 = vshrl.u32 %v1283, 7
        %v1285 = vsub.s32 0, %v1284
        %v1286 = vrot.slane %v1272, %v1285
        %v1287 = vlaneseq
        %v1288 = vshrl.u32 %v1287, 7
        %v1289 = vsub.s32 0, %v1288
        %v1290 = vrot.slane %v1273, %v1289
        %v1291 = vlaneseq
        %v1292 = vshrl.u32 %v1291, 7
        %v1293 = vsub.s32 0, %v1292
        %v1294 = vrot.slane %v1274, %v1293
        %v1300 = vcombine.low %v1278, %v1282
        %v1301 = vcombine.low %v1286, %v1290
        %v1303 = vunpack.c.l.s4 1983009808
        %v1304 = vunpack.c.0.s8 %v1303
        %v1305 = vlaneseq
        %v1306 = vshrl.u32 %v1305, 7
        %v1307 = vsub.s32 %v1304, %v1306
        %v1308 = vrot.slane %v1300, %v1307
        %v1310 = vunpack.c.l.s4 1983009808
        %v1311 = vunpack.c.0.s8 %v1310
        %v1312 = vlaneseq
        %v1313 = vshrl.u32 %v1312, 7
        %v1314 = vsub.s32 %v1311, %v1313
        %v1315 = vrot.slane %v1301, %v1314
        %v1316 = vcombine.low %v1308, %v1315
        %v1318 = vunpack.c.l.s4 1983009808
        %v1319 = vunpack.c.0.s8 %v1318
        %v1320 = vlaneseq
        %v1321 = vshrl.u32 %v1320, 7
        %v1322 = vsub.s32 %v1319, %v1321
        %v1323 = vrot.slane %v1294, %v1322
        %v1326 = vmul.f32 %v1125, %v1316
        %v1327 = vmul.f32 %v1126, %v1323
        %s1328 = scalar_lea.vmem %s135, 20 [#allocation5]
        %1329 = vst [vmem:[%s1328] sm:$0xff] %v1326
        %1330 = vst [vmem:[%s1328 + $0x8] sm:$0x3] %v1327
        %s1331 = scalar_lea.vmem %s117, 30 [#allocation2]
        %v1332 = vld [vmem:[%s1331] sm:$0xff]
        %v1333 = vld [vmem:[%s1331 + $0x8] sm:$0x3]
        %v1336 = vcombine.high %v1332, %v1332
        %v1338 = vunpack.c.l.s4 1983009808
        %v1339 = vunpack.c.0.s8 %v1338
        %v1340 = vlaneseq
        %v1341 = vshrl.u32 %v1340, 7
        %v1342 = vsub.s32 %v1339, %v1341
        %v1343 = vrot.slane %v1332, %v1342
        %v1345 = vunpack.c.l.s4 1983009808
        %v1346 = vunpack.c.0.s8 %v1345
        %v1347 = vlaneseq
        %v1348 = vshrl.u32 %v1347, 7
        %v1349 = vsub.s32 %v1346, %v1348
        %v1350 = vrot.slane %v1336, %v1349
        %v1351 = vcombine.high %v1343, %v1343
        %v1352 = vcombine.high %v1350, %v1350
        %v1354 = vunpack.c.l.s4 1983009808
        %v1355 = vunpack.c.0.s8 %v1354
        %v1356 = vlaneseq
        %v1357 = vshrl.u32 %v1356, 7
        %v1358 = vsub.s32 %v1355, %v1357
        %v1359 = vrot.slane %v1333, %v1358
        %v1365 = vsel %vm171, %v1343, 0.0
        %v1366 = vrot.slane %v1365, 4
        %v1367 = vadd.f32 %v1365, %v1366
        %v1368 = vrot.slane %v1367, 2
        %v1369 = vadd.f32 %v1367, %v1368
        %v1370 = vrot.slane %v1369, 1
        %v1371 = vadd.f32 %v1369, %v1370
        %v1372 = vsel %vm171, %v1351, 0.0
        %v1373 = vrot.slane %v1372, 4
        %v1374 = vadd.f32 %v1372, %v1373
        %v1375 = vrot.slane %v1374, 2
        %v1376 = vadd.f32 %v1374, %v1375
        %v1377 = vrot.slane %v1376, 1
        %v1378 = vadd.f32 %v1376, %v1377
        %v1379 = vsel %vm171, %v1350, 0.0
        %v1380 = vrot.slane %v1379, 4
        %v1381 = vadd.f32 %v1379, %v1380
        %v1382 = vrot.slane %v1381, 2
        %v1383 = vadd.f32 %v1381, %v1382
        %v1384 = vrot.slane %v1383, 1
        %v1385 = vadd.f32 %v1383, %v1384
        %v1386 = vsel %vm171, %v1352, 0.0
        %v1387 = vrot.slane %v1386, 4
        %v1388 = vadd.f32 %v1386, %v1387
        %v1389 = vrot.slane %v1388, 2
        %v1390 = vadd.f32 %v1388, %v1389
        %v1391 = vrot.slane %v1390, 1
        %v1392 = vadd.f32 %v1390, %v1391
        %v1393 = vsel %vm171, %v1359, 0.0
        %v1394 = vrot.slane %v1393, 4
        %v1395 = vadd.f32 %v1393, %v1394
        %v1396 = vrot.slane %v1395, 2
        %v1397 = vadd.f32 %v1395, %v1396
        %v1398 = vrot.slane %v1397, 1
        %v1399 = vadd.f32 %v1397, %v1398
        %v1400 = vmul.f32 %v1371, %v207
        %v1401 = vmul.f32 %v1378, %v207
        %v1402 = vmul.f32 %v1385, %v207
        %v1403 = vmul.f32 %v1392, %v207
        %v1404 = vmul.f32 %v1399, %v207
        %1405 = vrot.lane.b32.xlu0 %v1400, 80
        %v1406 = vpop.permute.xlu0 %1405
        %1407 = vrot.lane.b32.xlu0 %v1401, 80
        %v1408 = vpop.permute.xlu0 %1407
        %1409 = vrot.lane.b32.xlu0 %v1402, 80
        %v1410 = vpop.permute.xlu0 %1409
        %1411 = vrot.lane.b32.xlu0 %v1403, 80
        %v1412 = vpop.permute.xlu0 %1411
        %1413 = vrot.lane.b32.xlu0 %v1404, 80
        %v1414 = vpop.permute.xlu0 %1413
        %v1415 = vsel %vm225, %v1412, %v1414
        %v1416 = vsel %vm225, %v1410, %v1412
        %v1417 = vsel %vm225, %v1408, %v1410
        %v1418 = vsel %vm225, %v1406, %v1408
        %v1419 = vsel %vm225, %v1414, %v1406
        %v1420 = vadd.f32 %v1400, %v1419
        %v1421 = vadd.f32 %v1401, %v1418
        %v1422 = vadd.f32 %v1402, %v1417
        %v1423 = vadd.f32 %v1403, %v1416
        %v1424 = vadd.f32 %v1404, %v1415
        %1425 = vrot.lane.b32.xlu0 %v1420, 32
        %v1426 = vpop.permute.xlu0 %1425
        %1427 = vrot.lane.b32.xlu0 %v1421, 32
        %v1428 = vpop.permute.xlu0 %1427
        %1429 = vrot.lane.b32.xlu0 %v1422, 32
        %v1430 = vpop.permute.xlu0 %1429
        %1431 = vrot.lane.b32.xlu0 %v1423, 32
        %v1432 = vpop.permute.xlu0 %1431
        %1433 = vrot.lane.b32.xlu0 %v1424, 32
        %v1434 = vpop.permute.xlu0 %1433
        %v1435 = vsel %vm246, %v1432, %v1434
        %v1436 = vsel %vm246, %v1430, %v1432
        %v1437 = vsel %vm246, %v1428, %v1430
        %v1438 = vsel %vm246, %v1426, %v1428
        %v1439 = vsel %vm246, %v1434, %v1426
        %v1440 = vadd.f32 %v1420, %v1435
        %v1441 = vadd.f32 %v1421, %v1439
        %v1442 = vadd.f32 %v1422, %v1438
        %v1443 = vadd.f32 %v1423, %v1437
        %v1444 = vadd.f32 %v1424, %v1436
        %1445 = vrot.lane.b32.xlu0 %v1440, 64
        %v1446 = vpop.permute.xlu0 %1445
        %1447 = vrot.lane.b32.xlu0 %v1441, 64
        %v1448 = vpop.permute.xlu0 %1447
        %1449 = vrot.lane.b32.xlu0 %v1442, 64
        %v1450 = vpop.permute.xlu0 %1449
        %1451 = vrot.lane.b32.xlu0 %v1443, 64
        %v1452 = vpop.permute.xlu0 %1451
        %1453 = vrot.lane.b32.xlu0 %v1444, 64
        %v1454 = vpop.permute.xlu0 %1453
        %v1455 = vsel %vm267, %v1452, %v1454
        %v1456 = vsel %vm267, %v1450, %v1452
        %v1457 = vsel %vm267, %v1448, %v1450
        %v1458 = vsel %vm267, %v1446, %v1448
        %v1459 = vsel %vm267, %v1454, %v1446
        %v1460 = vadd.f32 %v1440, %v1456
        %v1461 = vadd.f32 %v1441, %v1455
        %v1462 = vadd.f32 %v1442, %v1459
        %v1463 = vadd.f32 %v1443, %v1458
        %v1464 = vadd.f32 %v1444, %v1457
        %v1465 = vmul.f32 %v1460, 0.125
        %v1466 = vmul.f32 %v1461, 0.125
        %v1467 = vmul.f32 %v1462, 0.125
        %v1468 = vmul.f32 %v1463, 0.125
        %v1469 = vmul.f32 %v1464, 0.125
        %v1470 = vlaneseq
        %v1471 = vshrl.u32 %v1470, 7
        %v1472 = vsub.s32 0, %v1471
        %v1473 = vrot.slane %v1465, %v1472
        %v1474 = vlaneseq
        %v1475 = vshrl.u32 %v1474, 7
        %v1476 = vsub.s32 0, %v1475
        %v1477 = vrot.slane %v1466, %v1476
        %v1478 = vlaneseq
        %v1479 = vshrl.u32 %v1478, 7
        %v1480 = vsub.s32 0, %v1479
        %v1481 = vrot.slane %v1467, %v1480
        %v1482 = vlaneseq
        %v1483 = vshrl.u32 %v1482, 7
        %v1484 = vsub.s32 0, %v1483
        %v1485 = vrot.slane %v1468, %v1484
        %v1486 = vlaneseq
        %v1487 = vshrl.u32 %v1486, 7
        %v1488 = vsub.s32 0, %v1487
        %v1489 = vrot.slane %v1469, %v1488
        %v1495 = vcombine.low %v1473, %v1477
        %v1496 = vcombine.low %v1481, %v1485
        %v1498 = vunpack.c.l.s4 1983009808
        %v1499 = vunpack.c.0.s8 %v1498
        %v1500 = vlaneseq
        %v1501 = vshrl.u32 %v1500, 7
        %v1502 = vsub.s32 %v1499, %v1501
        %v1503 = vrot.slane %v1495, %v1502
        %v1505 = vunpack.c.l.s4 1983009808
        %v1506 = vunpack.c.0.s8 %v1505
        %v1507 = vlaneseq
        %v1508 = vshrl.u32 %v1507, 7
        %v1509 = vsub.s32 %v1506, %v1508
        %v1510 = vrot.slane %v1496, %v1509
        %v1511 = vcombine.low %v1503, %v1510
        %v1513 = vunpack.c.l.s4 1983009808
        %v1514 = vunpack.c.0.s8 %v1513
        %v1515 = vlaneseq
        %v1516 = vshrl.u32 %v1515, 7
        %v1517 = vsub.s32 %v1514, %v1516
        %v1518 = vrot.slane %v1489, %v1517
        %v1521 = vsub.f32 %v1332, %v1511
        %v1522 = vsub.f32 %v1333, %v1518
        %v1523 = vmul.f32 %v1521, %v1521
        %v1524 = vmul.f32 %v1522, %v1522
        %v1527 = vcombine.high %v1523, %v1523
        %v1529 = vunpack.c.l.s4 1983009808
        %v1530 = vunpack.c.0.s8 %v1529
        %v1531 = vlaneseq
        %v1532 = vshrl.u32 %v1531, 7
        %v1533 = vsub.s32 %v1530, %v1532
        %v1534 = vrot.slane %v1523, %v1533
        %v1536 = vunpack.c.l.s4 1983009808
        %v1537 = vunpack.c.0.s8 %v1536
        %v1538 = vlaneseq
        %v1539 = vshrl.u32 %v1538, 7
        %v1540 = vsub.s32 %v1537, %v1539
        %v1541 = vrot.slane %v1527, %v1540
        %v1542 = vcombine.high %v1534, %v1534
        %v1543 = vcombine.high %v1541, %v1541
        %v1545 = vunpack.c.l.s4 1983009808
        %v1546 = vunpack.c.0.s8 %v1545
        %v1547 = vlaneseq
        %v1548 = vshrl.u32 %v1547, 7
        %v1549 = vsub.s32 %v1546, %v1548
        %v1550 = vrot.slane %v1524, %v1549
        %v1556 = vsel %vm171, %v1534, 0.0
        %v1557 = vrot.slane %v1556, 4
        %v1558 = vadd.f32 %v1556, %v1557
        %v1559 = vrot.slane %v1558, 2
        %v1560 = vadd.f32 %v1558, %v1559
        %v1561 = vrot.slane %v1560, 1
        %v1562 = vadd.f32 %v1560, %v1561
        %v1563 = vsel %vm171, %v1542, 0.0
        %v1564 = vrot.slane %v1563, 4
        %v1565 = vadd.f32 %v1563, %v1564
        %v1566 = vrot.slane %v1565, 2
        %v1567 = vadd.f32 %v1565, %v1566
        %v1568 = vrot.slane %v1567, 1
        %v1569 = vadd.f32 %v1567, %v1568
        %v1570 = vsel %vm171, %v1541, 0.0
        %v1571 = vrot.slane %v1570, 4
        %v1572 = vadd.f32 %v1570, %v1571
        %v1573 = vrot.slane %v1572, 2
        %v1574 = vadd.f32 %v1572, %v1573
        %v1575 = vrot.slane %v1574, 1
        %v1576 = vadd.f32 %v1574, %v1575
        %v1577 = vsel %vm171, %v1543, 0.0
        %v1578 = vrot.slane %v1577, 4
        %v1579 = vadd.f32 %v1577, %v1578
        %v1580 = vrot.slane %v1579, 2
        %v1581 = vadd.f32 %v1579, %v1580
        %v1582 = vrot.slane %v1581, 1
        %v1583 = vadd.f32 %v1581, %v1582
        %v1584 = vsel %vm171, %v1550, 0.0
        %v1585 = vrot.slane %v1584, 4
        %v1586 = vadd.f32 %v1584, %v1585
        %v1587 = vrot.slane %v1586, 2
        %v1588 = vadd.f32 %v1586, %v1587
        %v1589 = vrot.slane %v1588, 1
        %v1590 = vadd.f32 %v1588, %v1589
        %v1591 = vmul.f32 %v1562, %v207
        %v1592 = vmul.f32 %v1569, %v207
        %v1593 = vmul.f32 %v1576, %v207
        %v1594 = vmul.f32 %v1583, %v207
        %v1595 = vmul.f32 %v1590, %v207
        %1596 = vrot.lane.b32.xlu0 %v1591, 80
        %v1597 = vpop.permute.xlu0 %1596
        %1598 = vrot.lane.b32.xlu0 %v1592, 80
        %v1599 = vpop.permute.xlu0 %1598
        %1600 = vrot.lane.b32.xlu0 %v1593, 80
        %v1601 = vpop.permute.xlu0 %1600
        %1602 = vrot.lane.b32.xlu0 %v1594, 80
        %v1603 = vpop.permute.xlu0 %1602
        %1604 = vrot.lane.b32.xlu0 %v1595, 80
        %v1605 = vpop.permute.xlu0 %1604
        %v1606 = vsel %vm225, %v1603, %v1605
        %v1607 = vsel %vm225, %v1601, %v1603
        %v1608 = vsel %vm225, %v1599, %v1601
        %v1609 = vsel %vm225, %v1597, %v1599
        %v1610 = vsel %vm225, %v1605, %v1597
        %v1611 = vadd.f32 %v1591, %v1610
        %v1612 = vadd.f32 %v1592, %v1609
        %v1613 = vadd.f32 %v1593, %v1608
        %v1614 = vadd.f32 %v1594, %v1607
        %v1615 = vadd.f32 %v1595, %v1606
        %1616 = vrot.lane.b32.xlu0 %v1611, 32
        %v1617 = vpop.permute.xlu0 %1616
        %1618 = vrot.lane.b32.xlu0 %v1612, 32
        %v1619 = vpop.permute.xlu0 %1618
        %1620 = vrot.lane.b32.xlu0 %v1613, 32
        %v1621 = vpop.permute.xlu0 %1620
        %1622 = vrot.lane.b32.xlu0 %v1614, 32
        %v1623 = vpop.permute.xlu0 %1622
        %1624 = vrot.lane.b32.xlu0 %v1615, 32
        %v1625 = vpop.permute.xlu0 %1624
        %v1626 = vsel %vm246, %v1623, %v1625
        %v1627 = vsel %vm246, %v1621, %v1623
        %v1628 = vsel %vm246, %v1619, %v1621
        %v1629 = vsel %vm246, %v1617, %v1619
        %v1630 = vsel %vm246, %v1625, %v1617
        %v1631 = vadd.f32 %v1611, %v1626
        %v1632 = vadd.f32 %v1612, %v1630
        %v1633 = vadd.f32 %v1613, %v1629
        %v1634 = vadd.f32 %v1614, %v1628
        %v1635 = vadd.f32 %v1615, %v1627
        %1636 = vrot.lane.b32.xlu0 %v1631, 64
        %v1637 = vpop.permute.xlu0 %1636
        %1638 = vrot.lane.b32.xlu0 %v1632, 64
        %v1639 = vpop.permute.xlu0 %1638
        %1640 = vrot.lane.b32.xlu0 %v1633, 64
        %v1641 = vpop.permute.xlu0 %1640
        %1642 = vrot.lane.b32.xlu0 %v1634, 64
        %v1643 = vpop.permute.xlu0 %1642
        %1644 = vrot.lane.b32.xlu0 %v1635, 64
        %v1645 = vpop.permute.xlu0 %1644
        %v1646 = vsel %vm267, %v1643, %v1645
        %v1647 = vsel %vm267, %v1641, %v1643
        %v1648 = vsel %vm267, %v1639, %v1641
        %v1649 = vsel %vm267, %v1637, %v1639
        %v1650 = vsel %vm267, %v1645, %v1637
        %v1651 = vadd.f32 %v1631, %v1647
        %v1652 = vadd.f32 %v1632, %v1646
        %v1653 = vadd.f32 %v1633, %v1650
        %v1654 = vadd.f32 %v1634, %v1649
        %v1655 = vadd.f32 %v1635, %v1648
        %v1656 = vmul.f32 %v1651, 0.125
        %v1657 = vmul.f32 %v1652, 0.125
        %v1658 = vmul.f32 %v1653, 0.125
        %v1659 = vmul.f32 %v1654, 0.125
        %v1660 = vmul.f32 %v1655, 0.125
        %v1661 = vadd.f32 %v1656, 1e-05
        %v1662 = vadd.f32 %v1657, 1e-05
        %v1663 = vadd.f32 %v1658, 1e-05
        %v1664 = vadd.f32 %v1659, 1e-05
        %v1665 = vadd.f32 %v1660, 1e-05
        %v1666 = vrsqrt.pop %v1661
        %v1667 = vrsqrt.pop %v1662
        %v1668 = vrsqrt.pop %v1663
        %v1669 = vrsqrt.pop %v1664
        %v1670 = vrsqrt.pop %v1665
        %v1671 = vlaneseq
        %v1672 = vshrl.u32 %v1671, 7
        %v1673 = vsub.s32 0, %v1672
        %v1674 = vrot.slane %v1666, %v1673
        %v1675 = vlaneseq
        %v1676 = vshrl.u32 %v1675, 7
        %v1677 = vsub.s32 0, %v1676
        %v1678 = vrot.slane %v1667, %v1677
        %v1679 = vlaneseq
        %v1680 = vshrl.u32 %v1679, 7
        %v1681 = vsub.s32 0, %v1680
        %v1682 = vrot.slane %v1668, %v1681
        %v1683 = vlaneseq
        %v1684 = vshrl.u32 %v1683, 7
        %v1685 = vsub.s32 0, %v1684
        %v1686 = vrot.slane %v1669, %v1685
        %v1687 = vlaneseq
        %v1688 = vshrl.u32 %v1687, 7
        %v1689 = vsub.s32 0, %v1688
        %v1690 = vrot.slane %v1670, %v1689
        %v1696 = vcombine.low %v1674, %v1678
        %v1697 = vcombine.low %v1682, %v1686
        %v1699 = vunpack.c.l.s4 1983009808
        %v1700 = vunpack.c.0.s8 %v1699
        %v1701 = vlaneseq
        %v1702 = vshrl.u32 %v1701, 7
        %v1703 = vsub.s32 %v1700, %v1702
        %v1704 = vrot.slane %v1696, %v1703
        %v1706 = vunpack.c.l.s4 1983009808
        %v1707 = vunpack.c.0.s8 %v1706
        %v1708 = vlaneseq
        %v1709 = vshrl.u32 %v1708, 7
        %v1710 = vsub.s32 %v1707, %v1709
        %v1711 = vrot.slane %v1697, %v1710
        %v1712 = vcombine.low %v1704, %v1711
        %v1714 = vunpack.c.l.s4 1983009808
        %v1715 = vunpack.c.0.s8 %v1714
        %v1716 = vlaneseq
        %v1717 = vshrl.u32 %v1716, 7
        %v1718 = vsub.s32 %v1715, %v1717
        %v1719 = vrot.slane %v1690, %v1718
        %v1722 = vmul.f32 %v1521, %v1712
        %v1723 = vmul.f32 %v1522, %v1719
        %s1724 = scalar_lea.vmem %s135, 30 [#allocation5]
        %1725 = vst [vmem:[%s1724] sm:$0xff] %v1722
        %1726 = vst [vmem:[%s1724 + $0x8] sm:$0x3] %v1723
        %s1727 = sand.u32 %s52, 1
        %s1728 = scalar_lea.sflag [#allocation4], %s1727
        %s1729 = sand.u32 %s52, 1
        %s1730 = smul.addr %s1729, 40
        %s1731 = scalar_lea.vmem [#allocation5], %s1730
        // Predicated region
        $region29: #{tpu_custom_call.1} parent=23 // pred_check
          %p1732 = pneg %p62
        $region30: #{tpu_custom_call.1} parent=23 // pred_check_branch
          %1734 = sbr.rel (%p1732) target = $region32
        $region31: #{tpu_custom_call.1} parent=23 // pred_region
          %s1735 = smul.u32 4, %s18
          %s1737 = ssub.s32 640, 640
          %1738 = vsyncadd %s1728, %s1737
          %s1739 = smul.addr %s1735, 5
          %s1740 = smul.addr %s1739, 32
          %s1741 = scalar_lea.hbm %s1, %s1740
          %s1742 = sshll.u32 %s1731, 4
          %s1743 = int_to_ptr.vmem [resolvable:$true] %s1742
          %1748 = dma.vmem_to_hbm [thread:$0]  %s1743, 640, %s1741, %s1728, 160, 160, 10
        $region32: #{tpu_custom_call.1} parent=23 // pred_fallthru
          _
      $region24: #{tpu_custom_call.1} parent=5 // pred_fallthru
        _
      %p1749 = scmp.le.s32.totalorder 2, %s13
      // Predicated region
      $region33: #{tpu_custom_call.1} parent=5 // pred_check
        %p1750 = pneg %p1749
      $region34: #{tpu_custom_call.1} parent=5 // pred_check_branch
        %1752 = sbr.rel (%p1750) target = $region36
      $region35: #{tpu_custom_call.1} parent=5 // pred_region
        %s1753 = ssub.s32 %s13, 2
        // Predicated region
        $region37: #{tpu_custom_call.1} parent=35 // pred_check
          %p1754 = pneg %p68
        $region38: #{tpu_custom_call.1} parent=35 // pred_check_branch
          %1756 = sbr.rel (%p1754) target = $region40
        $region39: #{tpu_custom_call.1} parent=35 // pred_region
          %s1757 = sand.u32 %s53, 1
          %s1758 = scalar_lea.sflag [#allocation4], %s1757
          %s1759 = sand.u32 %s53, 1
          %s1760 = smul.addr %s1759, 40
          %s1761 = scalar_lea.vmem [#allocation5], %s1760
          %1762 = dma.done %s1758, 640
        $region40: #{tpu_custom_call.1} parent=35 // pred_fallthru
          _
      $region36: #{tpu_custom_call.1} parent=5 // pred_fallthru
        _
    $region6: #{tpu_custom_call.1} parent=1 // loop_footer
      %s17 = sadd.s32 1, %s13
    $region7: #{tpu_custom_call.1} parent=1 // loop_footer_branch
      %12 = sbr.rel target = $region3
    $region8: #{tpu_custom_call.1} parent=1 // loop_exit
      _
    %1763 = vsyncpa [#allocation3], 1
    %s1764 = scalar_lea.sflag [#allocation3], 1
    %1765 = vsyncpa %s1764, 1
    %1766 = vsyncpa [#allocation4], 1
    %s1767 = scalar_lea.sflag [#allocation4], 1
    %1768 = vsyncpa %s1767, 1

</llo_original>
